<compile_context>
chip_gen: v7x
topology: tpu7x:2x2x1
jax: 0.10.0
libtpu: 0.0.40
codegen_flags: <defaults>
</compile_context>

<pallas_src>
import functools

import jax
import jax.numpy as jnp
from jax.experimental import pallas as pl
from jax.experimental.pallas import tpu as pltpu

K = 4                               # kernel_size
STRIDE = 2                          # stride (module asserts stride > 1)
PAD = (K - 1) // 2                  # = 1
OUT_PAD = STRIDE - (K - 2 * PAD)    # = 0
KSUB = K // STRIDE                  # taps per dim per output parity = 2
NOFF = STRIDE + KSUB - 1            # distinct spatial offsets per dim = 3
NTAPS = NOFF ** 3                   # folded taps (all parities) = 27
NPAR = STRIDE ** 3                  # output parities = 8


def _deconv3d_kernel(x_ref, w_ref, b_ref, o_ref, lhs_ref, *,
                     Td, H, W, Cin, Kdim, Kpad, n_dt):
    """One grid step = one batch element x one depth tile.

    x_ref:   (1, Cin, (D+4)*(H+2)*(W+2))  zero-halo-padded, flattened input
                                          (fetched once per batch element).
    w_ref:   (8*Cout, Kpad)               packed weights, resident (constant map).
    b_ref:   (8*Cout, 1)                  per-result-row bias, resident.
    o_ref:   (1, 1, 8*Cout, Td*(H+2)*(W+2))  lane-dense parity-separated output.
    lhs_ref: (Kpad, Td*(H+2)*(W+2))       VMEM im2col scratch.
    """
    PP = (H + 2) * (W + 2)
    span = Td * PP

    if n_dt == 1:
        d_off = 0                                  # static slice offsets
    else:
        d_off = pl.program_id(1) * span            # dynamic depth-tile origin

    # ---- im2col: 27 contiguous shifted-window loads -> contraction rows ----
    tap = 0
    for od in range(NOFF):
        for oh in range(NOFF):
            for ow in range(NOFF):
                off = (od + 1) * PP + (oh - 1) * (W + 2) + (ow - 1)
                lhs_ref[tap * Cin:(tap + 1) * Cin, :] = (
                    x_ref[0, :, pl.ds(d_off + off, span)])
                tap += 1
    if Kpad > Kdim:
        # Padded contraction rows must never feed stale VMEM into the MXU.
        lhs_ref[Kdim:, :] = jnp.zeros((Kpad - Kdim, span), lhs_ref.dtype)

    # ---- one MXU matmul: spatial volume on the lane axis of the result ----
    acc = jnp.dot(w_ref[...], lhs_ref[...], preferred_element_type=jnp.float32)

    # ---- f32 bias + ReLU epilogue, fully lane-dense store ----
    y = jnp.maximum(acc + b_ref[...], 0.0)
    o_ref[0, 0] = y.astype(o_ref.dtype)


def _pack_weights(weight, Cin, Cout, Kpad, dtype):
    """ConvTranspose3d weight (Cin, Cout, 4, 4, 4) -> (8*Cout, Kpad) matrix.

    Row  = ((rd*2 + rh)*2 + rw)*Cout + co     (output parity, channel)
    Col  = ((od*3 + oh)*3 + ow)*Cin + ci      (spatial offset class, channel)
    Entry = weight[ci, co, 3-2*od+rd, 3-2*oh+rh, 3-2*ow+rw] when the tap
    (jd, jh, jw) = (od-rd, oh-rh, ow-rw) lies in {0,1}^3, else 0.
    """
    wt = weight.astype(jnp.float32)
    zero = jnp.zeros((Cout, Cin), jnp.float32)
    rows = []
    for rd in range(STRIDE):
        for rh in range(STRIDE):
            for rw in range(STRIDE):
                cols = []
                for od in range(NOFF):
                    for oh in range(NOFF):
                        for ow in range(NOFF):
                            valid = (0 <= od - rd < KSUB and
                                     0 <= oh - rh < KSUB and
                                     0 <= ow - rw < KSUB)
                            if valid:
                                kd = K - 1 - 2 * od + rd
                                kh = K - 1 - 2 * oh + rh
                                kw = K - 1 - 2 * ow + rw
                                cols.append(wt[:, :, kd, kh, kw].T)  # (Cout, Cin)
                            else:
                                cols.append(zero)
                rows.append(jnp.concatenate(cols, axis=1))           # (Cout, 27*Cin)
    w27 = jnp.concatenate(rows, axis=0)                              # (8*Cout, 27*Cin)
    pad = Kpad - w27.shape[1]
    if pad:
        w27 = jnp.pad(w27, ((0, 0), (0, pad)))                       # zero K padding
    return w27.astype(dtype)


def deconv3d_ccvnorm_forward(x, c, weight, bias, *, flag_bn=False, d_tile=None,
                             compute_dtype=jnp.bfloat16):
    """Forward pass of deconv3d_ccvnorm with default flags (bias=True, bn=False).

    x:      (N, Cin, D, H, W) float32 (PyTorch NCDHW)
    c:      conditioning input -- unused because flag_bn defaults to False
    weight: (Cin, Cout, 4, 4, 4) ConvTranspose3d weight (PyTorch layout)
    bias:   (Cout,)
    returns (N, Cout, 2D, 2H, 2W) float32
    """
    if flag_bn:
        # TODO(synk): CCVNorm conditional-normalization path not implemented.
        raise NotImplementedError("flag_bn=True (CCVNorm) is not supported")
    del c
    N, Cin, D, H, W = x.shape
    Cout = weight.shape[1]
    assert weight.shape == (Cin, Cout, K, K, K)

    PP = (H + 2) * (W + 2)
    n_rows = NPAR * Cout
    Kdim = NTAPS * Cin
    Kpad = ((Kdim + 127) // 128) * 128
    esz = jnp.dtype(compute_dtype).itemsize

    # ---- generation-aware VMEM budget ----
    try:
        vmem_cap = int(pltpu.get_tpu_info().vmem_capacity_bytes)
    except Exception:  # pragma: no cover - conservative fallback
        vmem_cap = 64 << 20

    def step_bytes(td):
        span_ = td * PP
        x_blk = Cin * (D + 4) * PP * esz
        w_blk = n_rows * Kpad * esz
        b_blk = n_rows * 4
        o_blk = n_rows * span_ * 4
        scr = Kpad * span_ * esz
        return 2 * (x_blk + w_blk + b_blk + o_blk) + scr   # double-buffered I/O

    # Single depth tile by default; split only if the per-step buffers are big.
    if d_tile is None:
        d_tile = D
        while step_bytes(d_tile) > vmem_cap // 2 and d_tile % 2 == 0:
            d_tile //= 2
    assert D % d_tile == 0
    n_dt = D // d_tile
    span = d_tile * PP

    vmem_limit = int(min(max(step_bytes(d_tile) + (4 << 20), 16 << 20),
                         (vmem_cap * 3) // 4))
    vmem_limit = max(vmem_limit, step_bytes(d_tile) + (2 << 20))

    # ---- host-side packing (single fused XLA pad/reshape, tiny weight pack) ----
    x_flat = jnp.pad(x.astype(compute_dtype),
                     ((0, 0), (0, 0), (2, 2), (1, 1), (1, 1))
                     ).reshape(N, Cin, (D + 4) * PP)
    w_pk = _pack_weights(weight, Cin, Cout, Kpad, compute_dtype)   # (8*Cout, Kpad)
    b_rows = jnp.tile(bias.astype(jnp.float32), NPAR).reshape(n_rows, 1)

    kernel = functools.partial(_deconv3d_kernel, Td=d_tile, H=H, W=W,
                               Cin=Cin, Kdim=Kdim, Kpad=Kpad, n_dt=n_dt)

    out_par = pl.pallas_call(
        kernel,
        out_shape=jax.ShapeDtypeStruct((N, n_dt, n_rows, span), jnp.float32),
        grid_spec=pltpu.PrefetchScalarGridSpec(
            num_scalar_prefetch=0,
            grid=(N, n_dt),
            in_specs=[
                # whole flattened padded volume of this batch element
                pl.BlockSpec((1, Cin, (D + 4) * PP), lambda n, t: (n, 0, 0)),
                # packed weights, untiled + constant map -> fetched once, resident
                pl.BlockSpec((n_rows, Kpad), lambda n, t: (0, 0)),
                # per-row bias, resident
                pl.BlockSpec((n_rows, 1), lambda n, t: (0, 0)),
            ],
            out_specs=pl.BlockSpec((1, 1, n_rows, span),
                                   lambda n, t: (n, t, 0, 0)),
            scratch_shapes=[pltpu.VMEM((Kpad, span), compute_dtype)],
        ),
        compiler_params=pltpu.CompilerParams(
            dimension_semantics=("parallel", "parallel"),
            vmem_limit_bytes=vmem_limit),
    )(x_flat, w_pk, b_rows)

    # ---- un-pack parities / padded plane back to NCDHW (one fused transpose) ----
    o = out_par.reshape(N, n_dt, STRIDE, STRIDE, STRIDE, Cout,
                        d_tile, H + 2, W + 2)
    o = o[..., 1:H + 1, 1:W + 1]                 # drop the halo columns/rows
    # axes: (n, t, rd, rh, rw, co, td, qh, qw) -> (n, co, t, td, rd, qh, rh, qw, rw)
    o = jnp.transpose(o, (0, 5, 1, 6, 2, 7, 3, 8, 4))
    return o.reshape(N, Cout, STRIDE * D, STRIDE * H, STRIDE * W)


def _reference_forward(x, weight, bias):
    """Pure-JAX reference (XLA conv) for the same forward pass."""
    rhs = jnp.transpose(weight[:, :, ::-1, ::-1, ::-1], (1, 0, 2, 3, 4))  # OIDHW
    y = jax.lax.conv_general_dilated(
        x, rhs,
        window_strides=(1, 1, 1),
        padding=[(K - 1 - PAD, K - 1 - PAD)] * 3,
        lhs_dilation=(STRIDE,) * 3,
        dimension_numbers=('NCDHW', 'OIDHW', 'NCDHW'),
        precision=jax.lax.Precision.HIGHEST)
    y = y + bias.reshape(1, -1, 1, 1, 1)
    return jnp.maximum(y, 0.0)


if __name__ == "__main__":
    key = jax.random.PRNGKey(0)
    kx, kc, kw, kb = jax.random.split(key, 4)

    # small shapes consistent with the module: in_planes=8, out_planes=4,
    # batch=2, input cost volume 8x8x8 -> output 16x16x16
    N, Cin, Cout, D, H, W = 2, 8, 4, 8, 8, 8
    DISPARITY = STRIDE * D  # the module's `D` arg (only used by the disabled CCVNorm)

    x = jax.random.normal(kx, (N, Cin, D, H, W), dtype=jnp.float32)
    c = jax.random.normal(kc, (N, 1, DISPARITY, H, W), dtype=jnp.float32)

    # deterministic synthetic parameters (ConvTranspose3d-style uniform init)
    fan = Cin * K * K * K
    bound = 1.0 / (fan ** 0.5)
    weight = jax.random.uniform(kw, (Cin, Cout, K, K, K),
                                jnp.float32, -bound, bound)
    bias = jax.random.uniform(kb, (Cout,), jnp.float32, -bound, bound)

    out = deconv3d_ccvnorm_forward(x, c, weight, bias)
    out = jax.block_until_ready(out)

    assert out.shape == (N, Cout, STRIDE * D, STRIDE * H, STRIDE * W), out.shape
    ref = _reference_forward(x, weight, bias)
    assert bool(jnp.allclose(out, ref, rtol=5e-2, atol=5e-2)), \
        float(jnp.max(jnp.abs(out - ref)))

    print("KERNEL_OK")
</pallas_src>

<mosaic_0001>
module attributes {stable_mosaic.version = 11 : i64} {
  func.func @_deconv3d_kernel(%arg0: i32, %arg1: i32, %arg2: memref<1x8x1200xbf16, #tpu.memory_space<vmem>>, %arg3: memref<32x256xbf16, #tpu.memory_space<vmem>>, %arg4: memref<32x1xf32, #tpu.memory_space<vmem>>, %arg5: memref<1x1x32x800xf32, #tpu.memory_space<vmem>>, %arg6: memref<256x800xbf16, #tpu.memory_space<vmem>>) attributes {dimension_semantics = [#tpu.dimension_semantics<parallel>, #tpu.dimension_semantics<parallel>], iteration_bounds = array<i64: 2, 1>, scalar_prefetch = 0 : i64, scratch_operands = 1 : i64, tpu.core_type = #tpu.core_type<tc>, window_params = [{transform_indices = @transform_0, window_bounds = array<i64: 1, 8, 1200>}, {pipeline_mode = #tpu.pipeline_mode<synchronous>, transform_indices = @transform_1, window_bounds = array<i64: 32, 256>}, {pipeline_mode = #tpu.pipeline_mode<synchronous>, transform_indices = @transform_2, window_bounds = array<i64: 32, 1>}, {transform_indices = @transform_3, window_bounds = array<i64: 1, 1, 32, 800>}]} {
    %c0 = arith.constant 0 : index
    %c0_0 = arith.constant 0 : index
    %c89 = arith.constant 89 : index
    %0 = vector.load %arg2[%c0, %c0_0, %c89] : memref<1x8x1200xbf16, #tpu.memory_space<vmem>>, vector<1x8x800xbf16>
    %1 = vector.shape_cast %0 : vector<1x8x800xbf16> to vector<8x800xbf16>
    %c0_1 = arith.constant 0 : index
    %c0_2 = arith.constant 0 : index
    %2 = vector.load %arg6[%c0_1, %c0_2] : memref<256x800xbf16, #tpu.memory_space<vmem>>, vector<8x800xbf16>
    tpu.vector_store %arg6[%c0_1, %c0_2], %1 {strides = array<i32>} : memref<256x800xbf16, #tpu.memory_space<vmem>>, vector<8x800xbf16>,
    %c0_3 = arith.constant 0 : index
    %c0_4 = arith.constant 0 : index
    %c90 = arith.constant 90 : index
    %3 = vector.load %arg2[%c0_3, %c0_4, %c90] : memref<1x8x1200xbf16, #tpu.memory_space<vmem>>, vector<1x8x800xbf16>
    %4 = vector.shape_cast %3 : vector<1x8x800xbf16> to vector<8x800xbf16>
    %c8 = arith.constant 8 : index
    %c0_5 = arith.constant 0 : index
    %5 = vector.load %arg6[%c8, %c0_5] : memref<256x800xbf16, #tpu.memory_space<vmem>>, vector<8x800xbf16>
    tpu.vector_store %arg6[%c8, %c0_5], %4 {strides = array<i32>} : memref<256x800xbf16, #tpu.memory_space<vmem>>, vector<8x800xbf16>,
    %c0_6 = arith.constant 0 : index
    %c0_7 = arith.constant 0 : index
    %c91 = arith.constant 91 : index
    %6 = vector.load %arg2[%c0_6, %c0_7, %c91] : memref<1x8x1200xbf16, #tpu.memory_space<vmem>>, vector<1x8x800xbf16>
    %7 = vector.shape_cast %6 : vector<1x8x800xbf16> to vector<8x800xbf16>
    %c16 = arith.constant 16 : index
    %c0_8 = arith.constant 0 : index
    %8 = vector.load %arg6[%c16, %c0_8] : memref<256x800xbf16, #tpu.memory_space<vmem>>, vector<8x800xbf16>
    tpu.vector_store %arg6[%c16, %c0_8], %7 {strides = array<i32>} : memref<256x800xbf16, #tpu.memory_space<vmem>>, vector<8x800xbf16>,
    %c0_9 = arith.constant 0 : index
    %c0_10 = arith.constant 0 : index
    %c99 = arith.constant 99 : index
    %9 = vector.load %arg2[%c0_9, %c0_10, %c99] : memref<1x8x1200xbf16, #tpu.memory_space<vmem>>, vector<1x8x800xbf16>
    %10 = vector.shape_cast %9 : vector<1x8x800xbf16> to vector<8x800xbf16>
    %c24 = arith.constant 24 : index
    %c0_11 = arith.constant 0 : index
    %11 = vector.load %arg6[%c24, %c0_11] : memref<256x800xbf16, #tpu.memory_space<vmem>>, vector<8x800xbf16>
    tpu.vector_store %arg6[%c24, %c0_11], %10 {strides = array<i32>} : memref<256x800xbf16, #tpu.memory_space<vmem>>, vector<8x800xbf16>,
    %c0_12 = arith.constant 0 : index
    %c0_13 = arith.constant 0 : index
    %c100 = arith.constant 100 : index
    %12 = vector.load %arg2[%c0_12, %c0_13, %c100] : memref<1x8x1200xbf16, #tpu.memory_space<vmem>>, vector<1x8x800xbf16>
    %13 = vector.shape_cast %12 : vector<1x8x800xbf16> to vector<8x800xbf16>
    %c32 = arith.constant 32 : index
    %c0_14 = arith.constant 0 : index
    %14 = vector.load %arg6[%c32, %c0_14] : memref<256x800xbf16, #tpu.memory_space<vmem>>, vector<8x800xbf16>
    tpu.vector_store %arg6[%c32, %c0_14], %13 {strides = array<i32>} : memref<256x800xbf16, #tpu.memory_space<vmem>>, vector<8x800xbf16>,
    %c0_15 = arith.constant 0 : index
    %c0_16 = arith.constant 0 : index
    %c101 = arith.constant 101 : index
    %15 = vector.load %arg2[%c0_15, %c0_16, %c101] : memref<1x8x1200xbf16, #tpu.memory_space<vmem>>, vector<1x8x800xbf16>
    %16 = vector.shape_cast %15 : vector<1x8x800xbf16> to vector<8x800xbf16>
    %c40 = arith.constant 40 : index
    %c0_17 = arith.constant 0 : index
    %17 = vector.load %arg6[%c40, %c0_17] : memref<256x800xbf16, #tpu.memory_space<vmem>>, vector<8x800xbf16>
    tpu.vector_store %arg6[%c40, %c0_17], %16 {strides = array<i32>} : memref<256x800xbf16, #tpu.memory_space<vmem>>, vector<8x800xbf16>,
    %c0_18 = arith.constant 0 : index
    %c0_19 = arith.constant 0 : index
    %c109 = arith.constant 109 : index
    %18 = vector.load %arg2[%c0_18, %c0_19, %c109] : memref<1x8x1200xbf16, #tpu.memory_space<vmem>>, vector<1x8x800xbf16>
    %19 = vector.shape_cast %18 : vector<1x8x800xbf16> to vector<8x800xbf16>
    %c48 = arith.constant 48 : index
    %c0_20 = arith.constant 0 : index
    %20 = vector.load %arg6[%c48, %c0_20] : memref<256x800xbf16, #tpu.memory_space<vmem>>, vector<8x800xbf16>
    tpu.vector_store %arg6[%c48, %c0_20], %19 {strides = array<i32>} : memref<256x800xbf16, #tpu.memory_space<vmem>>, vector<8x800xbf16>,
    %c0_21 = arith.constant 0 : index
    %c0_22 = arith.constant 0 : index
    %c110 = arith.constant 110 : index
    %21 = vector.load %arg2[%c0_21, %c0_22, %c110] : memref<1x8x1200xbf16, #tpu.memory_space<vmem>>, vector<1x8x800xbf16>
    %22 = vector.shape_cast %21 : vector<1x8x800xbf16> to vector<8x800xbf16>
    %c56 = arith.constant 56 : index
    %c0_23 = arith.constant 0 : index
    %23 = vector.load %arg6[%c56, %c0_23] : memref<256x800xbf16, #tpu.memory_space<vmem>>, vector<8x800xbf16>
    tpu.vector_store %arg6[%c56, %c0_23], %22 {strides = array<i32>} : memref<256x800xbf16, #tpu.memory_space<vmem>>, vector<8x800xbf16>,
    %c0_24 = arith.constant 0 : index
    %c0_25 = arith.constant 0 : index
    %c111 = arith.constant 111 : index
    %24 = vector.load %arg2[%c0_24, %c0_25, %c111] : memref<1x8x1200xbf16, #tpu.memory_space<vmem>>, vector<1x8x800xbf16>
    %25 = vector.shape_cast %24 : vector<1x8x800xbf16> to vector<8x800xbf16>
    %c64 = arith.constant 64 : index
    %c0_26 = arith.constant 0 : index
    %26 = vector.load %arg6[%c64, %c0_26] : memref<256x800xbf16, #tpu.memory_space<vmem>>, vector<8x800xbf16>
    tpu.vector_store %arg6[%c64, %c0_26], %25 {strides = array<i32>} : memref<256x800xbf16, #tpu.memory_space<vmem>>, vector<8x800xbf16>,
    %c0_27 = arith.constant 0 : index
    %c0_28 = arith.constant 0 : index
    %c189 = arith.constant 189 : index
    %27 = vector.load %arg2[%c0_27, %c0_28, %c189] : memref<1x8x1200xbf16, #tpu.memory_space<vmem>>, vector<1x8x800xbf16>
    %28 = vector.shape_cast %27 : vector<1x8x800xbf16> to vector<8x800xbf16>
    %c72 = arith.constant 72 : index
    %c0_29 = arith.constant 0 : index
    %29 = vector.load %arg6[%c72, %c0_29] : memref<256x800xbf16, #tpu.memory_space<vmem>>, vector<8x800xbf16>
    tpu.vector_store %arg6[%c72, %c0_29], %28 {strides = array<i32>} : memref<256x800xbf16, #tpu.memory_space<vmem>>, vector<8x800xbf16>,
    %c0_30 = arith.constant 0 : index
    %c0_31 = arith.constant 0 : index
    %c190 = arith.constant 190 : index
    %30 = vector.load %arg2[%c0_30, %c0_31, %c190] : memref<1x8x1200xbf16, #tpu.memory_space<vmem>>, vector<1x8x800xbf16>
    %31 = vector.shape_cast %30 : vector<1x8x800xbf16> to vector<8x800xbf16>
    %c80 = arith.constant 80 : index
    %c0_32 = arith.constant 0 : index
    %32 = vector.load %arg6[%c80, %c0_32] : memref<256x800xbf16, #tpu.memory_space<vmem>>, vector<8x800xbf16>
    tpu.vector_store %arg6[%c80, %c0_32], %31 {strides = array<i32>} : memref<256x800xbf16, #tpu.memory_space<vmem>>, vector<8x800xbf16>,
    %c0_33 = arith.constant 0 : index
    %c0_34 = arith.constant 0 : index
    %c191 = arith.constant 191 : index
    %33 = vector.load %arg2[%c0_33, %c0_34, %c191] : memref<1x8x1200xbf16, #tpu.memory_space<vmem>>, vector<1x8x800xbf16>
    %34 = vector.shape_cast %33 : vector<1x8x800xbf16> to vector<8x800xbf16>
    %c88 = arith.constant 88 : index
    %c0_35 = arith.constant 0 : index
    %35 = vector.load %arg6[%c88, %c0_35] : memref<256x800xbf16, #tpu.memory_space<vmem>>, vector<8x800xbf16>
    tpu.vector_store %arg6[%c88, %c0_35], %34 {strides = array<i32>} : memref<256x800xbf16, #tpu.memory_space<vmem>>, vector<8x800xbf16>,
    %c0_36 = arith.constant 0 : index
    %c0_37 = arith.constant 0 : index
    %c199 = arith.constant 199 : index
    %36 = vector.load %arg2[%c0_36, %c0_37, %c199] : memref<1x8x1200xbf16, #tpu.memory_space<vmem>>, vector<1x8x800xbf16>
    %37 = vector.shape_cast %36 : vector<1x8x800xbf16> to vector<8x800xbf16>
    %c96 = arith.constant 96 : index
    %c0_38 = arith.constant 0 : index
    %38 = vector.load %arg6[%c96, %c0_38] : memref<256x800xbf16, #tpu.memory_space<vmem>>, vector<8x800xbf16>
    tpu.vector_store %arg6[%c96, %c0_38], %37 {strides = array<i32>} : memref<256x800xbf16, #tpu.memory_space<vmem>>, vector<8x800xbf16>,
    %c0_39 = arith.constant 0 : index
    %c0_40 = arith.constant 0 : index
    %c200 = arith.constant 200 : index
    %39 = vector.load %arg2[%c0_39, %c0_40, %c200] : memref<1x8x1200xbf16, #tpu.memory_space<vmem>>, vector<1x8x800xbf16>
    %40 = vector.shape_cast %39 : vector<1x8x800xbf16> to vector<8x800xbf16>
    %c104 = arith.constant 104 : index
    %c0_41 = arith.constant 0 : index
    %41 = vector.load %arg6[%c104, %c0_41] : memref<256x800xbf16, #tpu.memory_space<vmem>>, vector<8x800xbf16>
    tpu.vector_store %arg6[%c104, %c0_41], %40 {strides = array<i32>} : memref<256x800xbf16, #tpu.memory_space<vmem>>, vector<8x800xbf16>,
    %c0_42 = arith.constant 0 : index
    %c0_43 = arith.constant 0 : index
    %c201 = arith.constant 201 : index
    %42 = vector.load %arg2[%c0_42, %c0_43, %c201] : memref<1x8x1200xbf16, #tpu.memory_space<vmem>>, vector<1x8x800xbf16>
    %43 = vector.shape_cast %42 : vector<1x8x800xbf16> to vector<8x800xbf16>
    %c112 = arith.constant 112 : index
    %c0_44 = arith.constant 0 : index
    %44 = vector.load %arg6[%c112, %c0_44] : memref<256x800xbf16, #tpu.memory_space<vmem>>, vector<8x800xbf16>
    tpu.vector_store %arg6[%c112, %c0_44], %43 {strides = array<i32>} : memref<256x800xbf16, #tpu.memory_space<vmem>>, vector<8x800xbf16>,
    %c0_45 = arith.constant 0 : index
    %c0_46 = arith.constant 0 : index
    %c209 = arith.constant 209 : index
    %45 = vector.load %arg2[%c0_45, %c0_46, %c209] : memref<1x8x1200xbf16, #tpu.memory_space<vmem>>, vector<1x8x800xbf16>
    %46 = vector.shape_cast %45 : vector<1x8x800xbf16> to vector<8x800xbf16>
    %c120 = arith.constant 120 : index
    %c0_47 = arith.constant 0 : index
    %47 = vector.load %arg6[%c120, %c0_47] : memref<256x800xbf16, #tpu.memory_space<vmem>>, vector<8x800xbf16>
    tpu.vector_store %arg6[%c120, %c0_47], %46 {strides = array<i32>} : memref<256x800xbf16, #tpu.memory_space<vmem>>, vector<8x800xbf16>,
    %c0_48 = arith.constant 0 : index
    %c0_49 = arith.constant 0 : index
    %c210 = arith.constant 210 : index
    %48 = vector.load %arg2[%c0_48, %c0_49, %c210] : memref<1x8x1200xbf16, #tpu.memory_space<vmem>>, vector<1x8x800xbf16>
    %49 = vector.shape_cast %48 : vector<1x8x800xbf16> to vector<8x800xbf16>
    %c128 = arith.constant 128 : index
    %c0_50 = arith.constant 0 : index
    %50 = vector.load %arg6[%c128, %c0_50] : memref<256x800xbf16, #tpu.memory_space<vmem>>, vector<8x800xbf16>
    tpu.vector_store %arg6[%c128, %c0_50], %49 {strides = array<i32>} : memref<256x800xbf16, #tpu.memory_space<vmem>>, vector<8x800xbf16>,
    %c0_51 = arith.constant 0 : index
    %c0_52 = arith.constant 0 : index
    %c211 = arith.constant 211 : index
    %51 = vector.load %arg2[%c0_51, %c0_52, %c211] : memref<1x8x1200xbf16, #tpu.memory_space<vmem>>, vector<1x8x800xbf16>
    %52 = vector.shape_cast %51 : vector<1x8x800xbf16> to vector<8x800xbf16>
    %c136 = arith.constant 136 : index
    %c0_53 = arith.constant 0 : index
    %53 = vector.load %arg6[%c136, %c0_53] : memref<256x800xbf16, #tpu.memory_space<vmem>>, vector<8x800xbf16>
    tpu.vector_store %arg6[%c136, %c0_53], %52 {strides = array<i32>} : memref<256x800xbf16, #tpu.memory_space<vmem>>, vector<8x800xbf16>,
    %c0_54 = arith.constant 0 : index
    %c0_55 = arith.constant 0 : index
    %c289 = arith.constant 289 : index
    %54 = vector.load %arg2[%c0_54, %c0_55, %c289] : memref<1x8x1200xbf16, #tpu.memory_space<vmem>>, vector<1x8x800xbf16>
    %55 = vector.shape_cast %54 : vector<1x8x800xbf16> to vector<8x800xbf16>
    %c144 = arith.constant 144 : index
    %c0_56 = arith.constant 0 : index
    %56 = vector.load %arg6[%c144, %c0_56] : memref<256x800xbf16, #tpu.memory_space<vmem>>, vector<8x800xbf16>
    tpu.vector_store %arg6[%c144, %c0_56], %55 {strides = array<i32>} : memref<256x800xbf16, #tpu.memory_space<vmem>>, vector<8x800xbf16>,
    %c0_57 = arith.constant 0 : index
    %c0_58 = arith.constant 0 : index
    %c290 = arith.constant 290 : index
    %57 = vector.load %arg2[%c0_57, %c0_58, %c290] : memref<1x8x1200xbf16, #tpu.memory_space<vmem>>, vector<1x8x800xbf16>
    %58 = vector.shape_cast %57 : vector<1x8x800xbf16> to vector<8x800xbf16>
    %c152 = arith.constant 152 : index
    %c0_59 = arith.constant 0 : index
    %59 = vector.load %arg6[%c152, %c0_59] : memref<256x800xbf16, #tpu.memory_space<vmem>>, vector<8x800xbf16>
    tpu.vector_store %arg6[%c152, %c0_59], %58 {strides = array<i32>} : memref<256x800xbf16, #tpu.memory_space<vmem>>, vector<8x800xbf16>,
    %c0_60 = arith.constant 0 : index
    %c0_61 = arith.constant 0 : index
    %c291 = arith.constant 291 : index
    %60 = vector.load %arg2[%c0_60, %c0_61, %c291] : memref<1x8x1200xbf16, #tpu.memory_space<vmem>>, vector<1x8x800xbf16>
    %61 = vector.shape_cast %60 : vector<1x8x800xbf16> to vector<8x800xbf16>
    %c160 = arith.constant 160 : index
    %c0_62 = arith.constant 0 : index
    %62 = vector.load %arg6[%c160, %c0_62] : memref<256x800xbf16, #tpu.memory_space<vmem>>, vector<8x800xbf16>
    tpu.vector_store %arg6[%c160, %c0_62], %61 {strides = array<i32>} : memref<256x800xbf16, #tpu.memory_space<vmem>>, vector<8x800xbf16>,
    %c0_63 = arith.constant 0 : index
    %c0_64 = arith.constant 0 : index
    %c299 = arith.constant 299 : index
    %63 = vector.load %arg2[%c0_63, %c0_64, %c299] : memref<1x8x1200xbf16, #tpu.memory_space<vmem>>, vector<1x8x800xbf16>
    %64 = vector.shape_cast %63 : vector<1x8x800xbf16> to vector<8x800xbf16>
    %c168 = arith.constant 168 : index
    %c0_65 = arith.constant 0 : index
    %65 = vector.load %arg6[%c168, %c0_65] : memref<256x800xbf16, #tpu.memory_space<vmem>>, vector<8x800xbf16>
    tpu.vector_store %arg6[%c168, %c0_65], %64 {strides = array<i32>} : memref<256x800xbf16, #tpu.memory_space<vmem>>, vector<8x800xbf16>,
    %c0_66 = arith.constant 0 : index
    %c0_67 = arith.constant 0 : index
    %c300 = arith.constant 300 : index
    %66 = vector.load %arg2[%c0_66, %c0_67, %c300] : memref<1x8x1200xbf16, #tpu.memory_space<vmem>>, vector<1x8x800xbf16>
    %67 = vector.shape_cast %66 : vector<1x8x800xbf16> to vector<8x800xbf16>
    %c176 = arith.constant 176 : index
    %c0_68 = arith.constant 0 : index
    %68 = vector.load %arg6[%c176, %c0_68] : memref<256x800xbf16, #tpu.memory_space<vmem>>, vector<8x800xbf16>
    tpu.vector_store %arg6[%c176, %c0_68], %67 {strides = array<i32>} : memref<256x800xbf16, #tpu.memory_space<vmem>>, vector<8x800xbf16>,
    %c0_69 = arith.constant 0 : index
    %c0_70 = arith.constant 0 : index
    %c301 = arith.constant 301 : index
    %69 = vector.load %arg2[%c0_69, %c0_70, %c301] : memref<1x8x1200xbf16, #tpu.memory_space<vmem>>, vector<1x8x800xbf16>
    %70 = vector.shape_cast %69 : vector<1x8x800xbf16> to vector<8x800xbf16>
    %c184 = arith.constant 184 : index
    %c0_71 = arith.constant 0 : index
    %71 = vector.load %arg6[%c184, %c0_71] : memref<256x800xbf16, #tpu.memory_space<vmem>>, vector<8x800xbf16>
    tpu.vector_store %arg6[%c184, %c0_71], %70 {strides = array<i32>} : memref<256x800xbf16, #tpu.memory_space<vmem>>, vector<8x800xbf16>,
    %c0_72 = arith.constant 0 : index
    %c0_73 = arith.constant 0 : index
    %c309 = arith.constant 309 : index
    %72 = vector.load %arg2[%c0_72, %c0_73, %c309] : memref<1x8x1200xbf16, #tpu.memory_space<vmem>>, vector<1x8x800xbf16>
    %73 = vector.shape_cast %72 : vector<1x8x800xbf16> to vector<8x800xbf16>
    %c192 = arith.constant 192 : index
    %c0_74 = arith.constant 0 : index
    %74 = vector.load %arg6[%c192, %c0_74] : memref<256x800xbf16, #tpu.memory_space<vmem>>, vector<8x800xbf16>
    tpu.vector_store %arg6[%c192, %c0_74], %73 {strides = array<i32>} : memref<256x800xbf16, #tpu.memory_space<vmem>>, vector<8x800xbf16>,
    %c0_75 = arith.constant 0 : index
    %c0_76 = arith.constant 0 : index
    %c310 = arith.constant 310 : index
    %75 = vector.load %arg2[%c0_75, %c0_76, %c310] : memref<1x8x1200xbf16, #tpu.memory_space<vmem>>, vector<1x8x800xbf16>
    %76 = vector.shape_cast %75 : vector<1x8x800xbf16> to vector<8x800xbf16>
    %c200_77 = arith.constant 200 : index
    %c0_78 = arith.constant 0 : index
    %77 = vector.load %arg6[%c200_77, %c0_78] : memref<256x800xbf16, #tpu.memory_space<vmem>>, vector<8x800xbf16>
    tpu.vector_store %arg6[%c200_77, %c0_78], %76 {strides = array<i32>} : memref<256x800xbf16, #tpu.memory_space<vmem>>, vector<8x800xbf16>,
    %c0_79 = arith.constant 0 : index
    %c0_80 = arith.constant 0 : index
    %c311 = arith.constant 311 : index
    %78 = vector.load %arg2[%c0_79, %c0_80, %c311] : memref<1x8x1200xbf16, #tpu.memory_space<vmem>>, vector<1x8x800xbf16>
    %79 = vector.shape_cast %78 : vector<1x8x800xbf16> to vector<8x800xbf16>
    %c208 = arith.constant 208 : index
    %c0_81 = arith.constant 0 : index
    %80 = vector.load %arg6[%c208, %c0_81] : memref<256x800xbf16, #tpu.memory_space<vmem>>, vector<8x800xbf16>
    tpu.vector_store %arg6[%c208, %c0_81], %79 {strides = array<i32>} : memref<256x800xbf16, #tpu.memory_space<vmem>>, vector<8x800xbf16>,
    %cst = arith.constant 0.000000e+00 : bf16
    %81 = vector.broadcast %cst : bf16 to vector<40x800xbf16>
    %c216 = arith.constant 216 : index
    %c0_82 = arith.constant 0 : index
    %82 = vector.load %arg6[%c216, %c0_82] : memref<256x800xbf16, #tpu.memory_space<vmem>>, vector<40x800xbf16>
    tpu.vector_store %arg6[%c216, %c0_82], %81 {strides = array<i32>} : memref<256x800xbf16, #tpu.memory_space<vmem>>, vector<40x800xbf16>,
    %c0_83 = arith.constant 0 : index
    %c0_84 = arith.constant 0 : index
    %83 = vector.load %arg3[%c0_83, %c0_84] : memref<32x256xbf16, #tpu.memory_space<vmem>>, vector<32x256xbf16>
    %c0_85 = arith.constant 0 : index
    %c0_86 = arith.constant 0 : index
    %84 = vector.load %arg6[%c0_85, %c0_86] : memref<256x800xbf16, #tpu.memory_space<vmem>>, vector<256x800xbf16>
    %cst_87 = arith.constant dense<0.000000e+00> : vector<32x800xf32>
    %85 = tpu.matmul %83, %84, %cst_87 {dimension_numbers = #tpu.dot_dimension_numbers<[1], [0], [0], [1], [0, 0, 1, 1], [], []>} : vector<32x256xbf16>, vector<256x800xbf16>, vector<32x800xf32> -> vector<32x800xf32>
    %c0_88 = arith.constant 0 : index
    %c0_89 = arith.constant 0 : index
    %86 = vector.load %arg4[%c0_88, %c0_89] : memref<32x1xf32, #tpu.memory_space<vmem>>, vector<32x1xf32>
    %87 = vector.broadcast %86 : vector<32x1xf32> to vector<32x800xf32>
    %88 = arith.addf %85, %87 : vector<32x800xf32>
    %cst_90 = arith.constant 0.000000e+00 : f32
    %89 = vector.broadcast %cst_90 : f32 to vector<32x800xf32>
    %90 = arith.maximumf %88, %89 : vector<32x800xf32>
    %c0_91 = arith.constant 0 : index
    %c0_92 = arith.constant 0 : index
    %c0_93 = arith.constant 0 : index
    %c0_94 = arith.constant 0 : index
    %91 = vector.load %arg5[%c0_91, %c0_92, %c0_93, %c0_94] : memref<1x1x32x800xf32, #tpu.memory_space<vmem>>, vector<1x1x32x800xf32>
    %92 = vector.shape_cast %91 : vector<1x1x32x800xf32> to vector<32x800xf32>
    %93 = vector.shape_cast %90 : vector<32x800xf32> to vector<1x1x32x800xf32>
    tpu.vector_store %arg5[%c0_91, %c0_92, %c0_93, %c0_94], %93 {strides = array<i32>} : memref<1x1x32x800xf32, #tpu.memory_space<vmem>>, vector<1x1x32x800xf32>,
    return
  }
  func.func @transform_0(%arg0: i32, %arg1: i32) -> (i32, i32, i32) {
    %c0_i32 = arith.constant 0 : i32
    %c0_i32_0 = arith.constant 0 : i32
    %c0_i32_1 = arith.constant 0 : i32
    return %arg0, %c0_i32, %c0_i32_0 : i32, i32, i32
  }
  func.func @transform_1(%arg0: i32, %arg1: i32) -> (i32, i32) {
    %c0_i32 = arith.constant 0 : i32
    %c0_i32_0 = arith.constant 0 : i32
    %c0_i32_1 = arith.constant 0 : i32
    return %c0_i32, %c0_i32_0 : i32, i32
  }
  func.func @transform_2(%arg0: i32, %arg1: i32) -> (i32, i32) {
    %c0_i32 = arith.constant 0 : i32
    %c0_i32_0 = arith.constant 0 : i32
    %c0_i32_1 = arith.constant 0 : i32
    return %c0_i32, %c0_i32_0 : i32, i32
  }
  func.func @transform_3(%arg0: i32, %arg1: i32) -> (i32, i32, i32, i32) {
    %c0_i32 = arith.constant 0 : i32
    %c0_i32_0 = arith.constant 0 : i32
    %c0_i32_1 = arith.constant 0 : i32
    return %arg0, %arg1, %c0_i32, %c0_i32_0 : i32, i32, i32, i32
  }
}

</mosaic_0001>

<llo_original>
// kernel: tpu_custom_call.1
$region0: #{tpu_custom_call.1}
  #allocation0 [shape = 'u32[]', space=smem, size = 0x4, offset = 0x4, fixed_abs, tag = 'smem constant byte address 0x4 - core index']
  #allocation1 [shape = 'u32[144,128]{1,0:T(1,128)}', space=vmem, size = 0x12000, scoped, tag = 'internal scratch']
  #allocation2 [shape = 'bf16[256,800]{1,0:T(16,128)(2,1)}', space=vmem, size = 0x70000, scoped, tag = 'scratch operand']
  %s0 = inlined_call_operand.hbm [shape: bf16[2,8,1200], index: 0, kind: input, shape index: {}]
  %s1 = inlined_call_operand.vmem [shape: bf16[32,256], index: 1, kind: input, shape index: {}]
  %s2 = inlined_call_operand.vmem [shape: f32[32,1], index: 2, kind: input, shape index: {}]
  %s3 = inlined_call_operand.hbm [shape: f32[2,1,32,800], index: 3, kind: output, shape index: {}]
  %s4 = sld [smem:[#allocation0]]
  $region49: #{tpu_custom_call.1} parent=0
    _
  %s6 = ssub.s32 1, %s4
  %s7 = scalar_select 0, %s6, %s4
  $region1: #{tpu_custom_call.1} parent=0
    #allocation3 [shape = 'u8[40960]{0}', space=vmem, size = 0xa000, scoped, tag = 'input window, operand 0']
    #allocation4 [shape = 's32[2]{0}', space=sflag, size = 0x8, scoped, tag = 'scoped memory for tpu_custom_call.1']
    #allocation5 [shape = 's32[2]{0}', space=sflag, size = 0x8, scoped, tag = 'scoped memory for tpu_custom_call.1']
    #allocation6 [shape = 'u8[229376]{0}', space=vmem, size = 0x38000, scoped, tag = 'output window, operand 0']
    %8 = vsyncpa [#allocation4], 0
    %s9 = scalar_lea.sflag [#allocation4], 1
    %10 = vsyncpa %s9, 0
    %11 = vsyncpa [#allocation5], 0
    %s12 = scalar_lea.sflag [#allocation5], 1
    %13 = vsyncpa %s12, 0
    loop: start=0, step=1, limit=4
    $region2: #{tpu_custom_call.1} parent=1 // loop_pre_header
      _
    $region3: #{tpu_custom_call.1} parent=1 // loop_header
      %s15 = sphi 0, %s19
      %p16 = scmp.ge.s32.totalorder %s15, 4
      %s22 = sphi 0, %s34
      %s23 = sphi 0, %s30
      %s24 = sphi 0, %s22
      %s25 = sphi 0, %s23
      %s26 = sphi 0, %s24
      %s27 = sphi 0, %s25
      %s37 = sphi 0, %s39
      %s40 = sphi 0, %s37
      %s41 = sphi 0, %s40
      %s57 = sphi 0, %s41
      %s61 = sphi 0, %s61
      %s63 = sphi 0, %s61
      %s64 = sphi 0, %s63
      %s78 = sphi 0, %s64
      %s82 = sphi 0, %s82
      %s84 = sphi 0, %s82
      %s85 = sphi 0, %s84
      %s99 = sphi 0, %s85
      %s107 = sphi 0, %s109
      %s110 = sphi 0, %s107
      %s111 = sphi 0, %s110
      %s127 = sphi 0, %s111
    $region4: #{tpu_custom_call.1} parent=1 // loop_header_branch
      %18 = sbr.rel (%p16) target = $region8
    $region5: #{tpu_custom_call.1} parent=1 // loop_body
      %s20 = ssub.s32 %s15, 1
      %s21 = ssub.s32 %s15, 2
      %s28 = sadd.s32 1, %s23
      %p29 = scmp.ge.s32.totalorder %s28, 1
      %s30 = scalar_select %p29, 0, %s28
      %s31 = sadd.s32 1, %s22
      %s32 = scalar_select %p29, %s31, %s22
      %p33 = scmp.ge.s32.totalorder %s32, 2
      %s34 = scalar_select %p33, 0, %s32
      %s35 = ssub.s32 %s22, %s34
      %p36 = scmp.eq.s32.totalorder %s35, 0
      %s38 = sadd.s32 %s37, 1
      %s39 = scalar_select %p36, %s37, %s38
      %p42 = pneg %p36
      %p43 = scmp.eq.s32.totalorder %s15, 1
      %p44 = por %p42, %p43
      %p45 = scmp.ne.s32.totalorder %s37, %s40
      %p46 = scmp.eq.s32.totalorder %s15, 0
      %p47 = por %p45, %p46
      %p48 = scmp.ne.s32.totalorder %s37, %s40
      %p49 = scmp.eq.s32.totalorder %s20, 1
      %p50 = por %p48, %p49
      %p51 = scmp.ne.s32.totalorder %s40, %s41
      %p52 = scmp.eq.s32.totalorder %s20, 0
      %p53 = por %p51, %p52
      %p54 = scmp.ne.s32.totalorder %s40, %s41
      %p55 = scmp.eq.s32.totalorder %s21, 1
      %p56 = por %p54, %p55
      %p58 = scmp.ne.s32.totalorder %s41, %s57
      %p59 = scmp.eq.s32.totalorder %s21, 0
      %p60 = por %p58, %p59
      %s62 = sadd.s32 %s61, 1
      %p65 = scmp.eq.s32.totalorder %s15, 1
      %p66 = scmp.ne.s32.totalorder %s61, %s63
      %p67 = scmp.eq.s32.totalorder %s15, 0
      %p68 = por %p66, %p67
      %p69 = scmp.ne.s32.totalorder %s61, %s63
      %p70 = scmp.eq.s32.totalorder %s20, 1
      %p71 = por %p69, %p70
      %p72 = scmp.ne.s32.totalorder %s63, %s64
      %p73 = scmp.eq.s32.totalorder %s20, 0
      %p74 = por %p72, %p73
      %p75 = scmp.ne.s32.totalorder %s63, %s64
      %p76 = scmp.eq.s32.totalorder %s21, 1
      %p77 = por %p75, %p76
      %p79 = scmp.ne.s32.totalorder %s64, %s78
      %p80 = scmp.eq.s32.totalorder %s21, 0
      %p81 = por %p79, %p80
      %s83 = sadd.s32 %s82, 1
      %p86 = scmp.eq.s32.totalorder %s15, 1
      %p87 = scmp.ne.s32.totalorder %s82, %s84
      %p88 = scmp.eq.s32.totalorder %s15, 0
      %p89 = por %p87, %p88
      %p90 = scmp.ne.s32.totalorder %s82, %s84
      %p91 = scmp.eq.s32.totalorder %s20, 1
      %p92 = por %p90, %p91
      %p93 = scmp.ne.s32.totalorder %s84, %s85
      %p94 = scmp.eq.s32.totalorder %s20, 0
      %p95 = por %p93, %p94
      %p96 = scmp.ne.s32.totalorder %s84, %s85
      %p97 = scmp.eq.s32.totalorder %s21, 1
      %p98 = por %p96, %p97
      %p100 = scmp.ne.s32.totalorder %s85, %s99
      %p101 = scmp.eq.s32.totalorder %s21, 0
      %p102 = por %p100, %p101
      %s103 = ssub.s32 %s22, %s34
      %s104 = ssub.s32 %s23, %s30
      %s105 = sor.u32 %s103, %s104
      %p106 = scmp.eq.s32.totalorder %s105, 0
      %s108 = sadd.s32 %s107, 1
      %s109 = scalar_select %p106, %s107, %s108
      %p112 = pneg %p106
      %p113 = scmp.eq.s32.totalorder %s15, 1
      %p114 = por %p112, %p113
      %p115 = scmp.ne.s32.totalorder %s107, %s110
      %p116 = scmp.eq.s32.totalorder %s15, 0
      %p117 = por %p115, %p116
      %p118 = scmp.ne.s32.totalorder %s107, %s110
      %p119 = scmp.eq.s32.totalorder %s20, 1
      %p120 = por %p118, %p119
      %p121 = scmp.ne.s32.totalorder %s110, %s111
      %p122 = scmp.eq.s32.totalorder %s20, 0
      %p123 = por %p121, %p122
      %p124 = scmp.ne.s32.totalorder %s110, %s111
      %p125 = scmp.eq.s32.totalorder %s21, 1
      %p126 = por %p124, %p125
      %p128 = scmp.ne.s32.totalorder %s111, %s127
      %p129 = scmp.eq.s32.totalorder %s21, 0
      %p130 = por %p128, %p129
      %p131 = scmp.le.s32.totalorder 1, %s15
      %p132 = scmp.lt.s32.totalorder %s15, 3
      %p133 = pnand %p131, %p132
      %p134 = pneg %p133
      // Predicated region
      $region9: #{tpu_custom_call.1} parent=5 // pred_check
        _
      $region10: #{tpu_custom_call.1} parent=5 // pred_check_branch
        %136 = sbr.rel (%p133) target = $region12
      $region11: #{tpu_custom_call.1} parent=5 // pred_region
        %s137 = ssub.s32 %s15, 1
        // Predicated region
        $region13: #{tpu_custom_call.1} parent=11 // pred_check
          %p138 = pneg %p74
        $region14: #{tpu_custom_call.1} parent=11 // pred_check_branch
          %140 = sbr.rel (%p138) target = $region16
        $region15: #{tpu_custom_call.1} parent=11 // pred_region
          _
        $region16: #{tpu_custom_call.1} parent=11 // pred_fallthru
          _
        // Predicated region
        $region17: #{tpu_custom_call.1} parent=11 // pred_check
          %p141 = pneg %p95
        $region18: #{tpu_custom_call.1} parent=11 // pred_check_branch
          %143 = sbr.rel (%p141) target = $region20
        $region19: #{tpu_custom_call.1} parent=11 // pred_region
          _
        $region20: #{tpu_custom_call.1} parent=11 // pred_fallthru
          _
      $region12: #{tpu_custom_call.1} parent=5 // pred_fallthru
        _
      %p144 = scmp.lt.s32.totalorder %s15, 2
      // Predicated region
      $region21: #{tpu_custom_call.1} parent=5 // pred_check
        %p145 = pneg %p144
      $region22: #{tpu_custom_call.1} parent=5 // pred_check_branch
        %147 = sbr.rel (%p145) target = $region24
      $region23: #{tpu_custom_call.1} parent=5 // pred_region
        // Predicated region
        $region25: #{tpu_custom_call.1} parent=23 // pred_check
          %p148 = pneg %p47
        $region26: #{tpu_custom_call.1} parent=23 // pred_check_branch
          %150 = sbr.rel (%p148) target = $region28
        $region27: #{tpu_custom_call.1} parent=23 // pred_region
          %s151 = sand.u32 %s37, 1
          %s152 = scalar_lea.sflag [#allocation4], %s151
          %s153 = sand.u32 %s37, 1
          %s154 = smul.addr %s153, 40
          %s155 = scalar_lea.vmem [#allocation3], %s154
          %s157 = ssub.s32 640, 640
          %158 = vsyncadd %s152, %s157
          %s159 = smul.addr %s22, 10
          %s160 = smul.addr %s159, 64
          %s161 = scalar_lea.hbm %s0, %s160
          %s163 = sshll.u32 %s155, 4
          %s164 = int_to_ptr.vmem [resolvable:$true] %s163
          %166 = dma.hbm_to_vmem [thread:$0]  %s161, 640, %s164, %s152
        $region28: #{tpu_custom_call.1} parent=23 // pred_fallthru
          _
      $region24: #{tpu_custom_call.1} parent=5 // pred_fallthru
        _
      %p167 = scmp.le.s32.totalorder 1, %s15
      %p168 = scmp.lt.s32.totalorder %s15, 3
      %p169 = pnand %p167, %p168
      %p170 = pneg %p169
      // Predicated region
      $region29: #{tpu_custom_call.1} parent=5 // pred_check
        _
      $region30: #{tpu_custom_call.1} parent=5 // pred_check_branch
        %172 = sbr.rel (%p169) target = $region32
      $region31: #{tpu_custom_call.1} parent=5 // pred_region
        %s173 = ssub.s32 %s15, 1
        %s174 = sand.u32 %s40, 1
        %s175 = scalar_lea.sflag [#allocation4], %s174
        %s176 = sand.u32 %s40, 1
        %s177 = smul.addr %s176, 40
        %s178 = scalar_lea.vmem [#allocation3], %s177
        // Predicated region
        $region33: #{tpu_custom_call.1} parent=31 // pred_check
          %p179 = pneg %p53
        $region34: #{tpu_custom_call.1} parent=31 // pred_check_branch
          %181 = sbr.rel (%p179) target = $region36
        $region35: #{tpu_custom_call.1} parent=31 // pred_region
          %182 = dma.done %s175, 640
        $region36: #{tpu_custom_call.1} parent=31 // pred_fallthru
          _
        %s183 = sand.u32 %s40, 1
        %s184 = scalar_lea.sflag [#allocation4], %s183
        %s185 = sand.u32 %s40, 1
        %s186 = smul.addr %s185, 40
        %s187 = scalar_lea.vmem [#allocation3], %s186
        %p188 = pneg %p53
        %p189 = pneg %p50
        %p190 = pneg %p74
        %p191 = pneg %p71
        %p192 = pneg %p95
        %p193 = pneg %p92
        %p194 = pneg %p123
        %p195 = pneg %p120
        %s196 = sand.u32 %s110, 1
        %s197 = scalar_lea.sflag [#allocation5], %s196
        %s198 = sand.u32 %s110, 1
        %s199 = smul.addr %s198, 224
        %s200 = scalar_lea.vmem [#allocation6], %s199
        %v202 = vld [vmem:[%s178] sm:$0xff]
        %v203 = vld [vmem:[%s178 + $0x8] sm:$0xff]
        %v204 = vld [vmem:[%s178 + $0x10] sm:$0xff]
        %v205 = vld [vmem:[%s178 + $0x18] sm:$0xf]
        %v210 = vunpack.c.l.b16 %v202
        %v211 = vunpack.c.h.b16 %v202
        %v212 = vunpack.c.l.b16 %v203
        %v213 = vunpack.c.h.b16 %v203
        %v214 = vunpack.c.l.b16 %v204
        %v215 = vunpack.c.h.b16 %v204
        %v216 = vunpack.c.l.b16 %v205
        %v217 = vpack.c.b16 %v210, %v210
        %v218 = vpack.c.b16 %v211, %v211
        %v219 = vpack.c.b16 %v212, %v212
        %v220 = vpack.c.b16 %v213, %v213
        %v221 = vpack.c.b16 %v214, %v214
        %v222 = vpack.c.b16 %v215, %v215
        %v223 = vpack.c.b16 %v216, %v216
        %224 = vrot.lane.b32.xlu0 %v217, 39
        %v225 = vpop.permute.xlu0 %224
        %226 = vrot.lane.b32.xlu0 %v218, 39
        %v227 = vpop.permute.xlu0 %226
        %228 = vrot.lane.b32.xlu0 %v219, 39
        %v229 = vpop.permute.xlu0 %228
        %230 = vrot.lane.b32.xlu0 %v220, 39
        %v231 = vpop.permute.xlu0 %230
        %232 = vrot.lane.b32.xlu0 %v221, 39
        %v233 = vpop.permute.xlu0 %232
        %234 = vrot.lane.b32.xlu0 %v222, 39
        %v235 = vpop.permute.xlu0 %234
        %236 = vrot.lane.b32.xlu0 %v223, 39
        %v237 = vpop.permute.xlu0 %236
        %vm238 = vcmask 318464
        %v239 = vsel %vm238, %v225, %v227
        %v240 = vsel %vm238, %v227, %v229
        %v241 = vsel %vm238, %v229, %v231
        %v242 = vsel %vm238, %v231, %v233
        %v243 = vsel %vm238, %v233, %v235
        %v244 = vsel %vm238, %v235, %v237
        %252 = vst [vmem:[#allocation2] sm:$0xf] %v239
        %253 = vst [vmem:[#allocation2 + $0x8] sm:$0xf] %v240
        %254 = vst [vmem:[#allocation2 + $0x10] sm:$0xf] %v241
        %255 = vst [vmem:[#allocation2 + $0x18] sm:$0xf] %v242
        %256 = vst [vmem:[#allocation2 + $0x20] sm:$0xf] %v243
        %257 = vst [vmem:[#allocation2 + $0x28] sm:$0xf] %v244
        %vm258 = vcmask 257024
        %259 = vst.msk [vmem:[#allocation2 + $0x30] sm:$0xf] %vm258, %v237
        %v260 = vld [vmem:[%s178] sm:$0xff]
        %v261 = vld [vmem:[%s178 + $0x8] sm:$0xff]
        %v262 = vld [vmem:[%s178 + $0x10] sm:$0xff]
        %v263 = vld [vmem:[%s178 + $0x18] sm:$0xf]
        %v268 = vunpack.c.l.b16 %v260
        %v269 = vunpack.c.h.b16 %v260
        %v270 = vunpack.c.l.b16 %v261
        %v271 = vunpack.c.h.b16 %v261
        %v272 = vunpack.c.l.b16 %v262
        %v273 = vunpack.c.h.b16 %v262
        %v274 = vunpack.c.l.b16 %v263
        %v275 = vpack.c.b16 %v268, %v268
        %v276 = vpack.c.b16 %v269, %v269
        %v277 = vpack.c.b16 %v270, %v270
        %v278 = vpack.c.b16 %v271, %v271
        %v279 = vpack.c.b16 %v272, %v272
        %v280 = vpack.c.b16 %v273, %v273
        %v281 = vpack.c.b16 %v274, %v274
        %282 = vrot.lane.b32.xlu0 %v275, 38
        %v283 = vpop.permute.xlu0 %282
        %284 = vrot.lane.b32.xlu0 %v276, 38
        %v285 = vpop.permute.xlu0 %284
        %286 = vrot.lane.b32.xlu0 %v277, 38
        %v287 = vpop.permute.xlu0 %286
        %288 = vrot.lane.b32.xlu0 %v278, 38
        %v289 = vpop.permute.xlu0 %288
        %290 = vrot.lane.b32.xlu0 %v279, 38
        %v291 = vpop.permute.xlu0 %290
        %292 = vrot.lane.b32.xlu0 %v280, 38
        %v293 = vpop.permute.xlu0 %292
        %294 = vrot.lane.b32.xlu0 %v281, 38
        %v295 = vpop.permute.xlu0 %294
        %vm296 = vcmask 310272
        %v297 = vsel %vm296, %v283, %v285
        %v298 = vsel %vm296, %v285, %v287
        %v299 = vsel %vm296, %v287, %v289
        %v300 = vsel %vm296, %v289, %v291
        %v301 = vsel %vm296, %v291, %v293
        %v302 = vsel %vm296, %v293, %v295
        %310 = vst [vmem:[#allocation2] sm:$0xf0] %v297
        %311 = vst [vmem:[#allocation2 + $0x8] sm:$0xf0] %v298
        %312 = vst [vmem:[#allocation2 + $0x10] sm:$0xf0] %v299
        %313 = vst [vmem:[#allocation2 + $0x18] sm:$0xf0] %v300
        %314 = vst [vmem:[#allocation2 + $0x20] sm:$0xf0] %v301
        %315 = vst [vmem:[#allocation2 + $0x28] sm:$0xf0] %v302
        %vm316 = vcmask 261124
        %317 = vst.msk [vmem:[#allocation2 + $0x30] sm:$0xf0] %vm316, %v295
        %v318 = vld [vmem:[%s178] sm:$0xff]
        %v319 = vld [vmem:[%s178 + $0x8] sm:$0xff]
        %v320 = vld [vmem:[%s178 + $0x10] sm:$0xff]
        %v321 = vld [vmem:[%s178 + $0x18] sm:$0xf]
        %v326 = vunpack.c.l.b16 %v318
        %v327 = vunpack.c.h.b16 %v318
        %v328 = vunpack.c.l.b16 %v319
        %v329 = vunpack.c.h.b16 %v319
        %v330 = vunpack.c.l.b16 %v320
        %v331 = vunpack.c.h.b16 %v320
        %v332 = vunpack.c.l.b16 %v321
        %v333 = vpack.c.b16 %v326, %v326
        %v334 = vpack.c.b16 %v327, %v327
        %v335 = vpack.c.b16 %v328, %v328
        %v336 = vpack.c.b16 %v329, %v329
        %v337 = vpack.c.b16 %v330, %v330
        %v338 = vpack.c.b16 %v331, %v331
        %v339 = vpack.c.b16 %v332, %v332
        %340 = vrot.lane.b32.xlu0 %v333, 37
        %v341 = vpop.permute.xlu0 %340
        %342 = vrot.lane.b32.xlu0 %v334, 37
        %v343 = vpop.permute.xlu0 %342
        %344 = vrot.lane.b32.xlu0 %v335, 37
        %v345 = vpop.permute.xlu0 %344
        %346 = vrot.lane.b32.xlu0 %v336, 37
        %v347 = vpop.permute.xlu0 %346
        %348 = vrot.lane.b32.xlu0 %v337, 37
        %v349 = vpop.permute.xlu0 %348
        %350 = vrot.lane.b32.xlu0 %v338, 37
        %v351 = vpop.permute.xlu0 %350
        %352 = vrot.lane.b32.xlu0 %v339, 37
        %v353 = vpop.permute.xlu0 %352
        %vm354 = vcmask 302080
        %v355 = vsel %vm354, %v341, %v343
        %v356 = vsel %vm354, %v343, %v345
        %v357 = vsel %vm354, %v345, %v347
        %v358 = vsel %vm354, %v347, %v349
        %v359 = vsel %vm354, %v349, %v351
        %v360 = vsel %vm354, %v351, %v353
        %368 = vst [vmem:[#allocation2 + $0x38] sm:$0xf] %v355
        %369 = vst [vmem:[#allocation2 + $0x40] sm:$0xf] %v356
        %370 = vst [vmem:[#allocation2 + $0x48] sm:$0xf] %v357
        %371 = vst [vmem:[#allocation2 + $0x50] sm:$0xf] %v358
        %372 = vst [vmem:[#allocation2 + $0x58] sm:$0xf] %v359
        %373 = vst [vmem:[#allocation2 + $0x60] sm:$0xf] %v360
        %374 = vst.msk [vmem:[#allocation2 + $0x68] sm:$0xf] %vm258, %v353
        %v375 = vld [vmem:[%s178] sm:$0xff]
        %v376 = vld [vmem:[%s178 + $0x8] sm:$0xff]
        %v377 = vld [vmem:[%s178 + $0x10] sm:$0xff]
        %v378 = vld [vmem:[%s178 + $0x18] sm:$0xff]
        %v383 = vunpack.c.l.b16 %v375
        %v384 = vunpack.c.h.b16 %v375
        %v385 = vunpack.c.l.b16 %v376
        %v386 = vunpack.c.h.b16 %v376
        %v387 = vunpack.c.l.b16 %v377
        %v388 = vunpack.c.h.b16 %v377
        %v389 = vunpack.c.l.b16 %v378
        %v390 = vunpack.c.h.b16 %v378
        %v391 = vpack.c.b16 %v383, %v383
        %v392 = vpack.c.b16 %v384, %v384
        %v393 = vpack.c.b16 %v385, %v385
        %v394 = vpack.c.b16 %v386, %v386
        %v395 = vpack.c.b16 %v387, %v387
        %v396 = vpack.c.b16 %v388, %v388
        %v397 = vpack.c.b16 %v389, %v389
        %v398 = vpack.c.b16 %v390, %v390
        %399 = vrot.lane.b32.xlu0 %v391, 29
        %v400 = vpop.permute.xlu0 %399
        %401 = vrot.lane.b32.xlu0 %v392, 29
        %v402 = vpop.permute.xlu0 %401
        %403 = vrot.lane.b32.xlu0 %v393, 29
        %v404 = vpop.permute.xlu0 %403
        %405 = vrot.lane.b32.xlu0 %v394, 29
        %v406 = vpop.permute.xlu0 %405
        %407 = vrot.lane.b32.xlu0 %v395, 29
        %v408 = vpop.permute.xlu0 %407
        %409 = vrot.lane.b32.xlu0 %v396, 29
        %v410 = vpop.permute.xlu0 %409
        %411 = vrot.lane.b32.xlu0 %v397, 29
        %v412 = vpop.permute.xlu0 %411
        %413 = vrot.lane.b32.xlu0 %v398, 29
        %v414 = vpop.permute.xlu0 %413
        %vm415 = vcmask 236544
        %v416 = vsel %vm415, %v400, %v402
        %v417 = vsel %vm415, %v402, %v404
        %v418 = vsel %vm415, %v404, %v406
        %v419 = vsel %vm415, %v406, %v408
        %v420 = vsel %vm415, %v408, %v410
        %v421 = vsel %vm415, %v410, %v412
        %v422 = vsel %vm415, %v412, %v414
        %430 = vst [vmem:[#allocation2 + $0x38] sm:$0xf0] %v416
        %431 = vst [vmem:[#allocation2 + $0x40] sm:$0xf0] %v417
        %432 = vst [vmem:[#allocation2 + $0x48] sm:$0xf0] %v418
        %433 = vst [vmem:[#allocation2 + $0x50] sm:$0xf0] %v419
        %434 = vst [vmem:[#allocation2 + $0x58] sm:$0xf0] %v420
        %435 = vst [vmem:[#allocation2 + $0x60] sm:$0xf0] %v421
        %436 = vst.msk [vmem:[#allocation2 + $0x68] sm:$0xf0] %vm316, %v422
        %v437 = vld [vmem:[%s178] sm:$0xff]
        %v438 = vld [vmem:[%s178 + $0x8] sm:$0xff]
        %v439 = vld [vmem:[%s178 + $0x10] sm:$0xff]
        %v440 = vld [vmem:[%s178 + $0x18] sm:$0xff]
        %v445 = vunpack.c.l.b16 %v437
        %v446 = vunpack.c.h.b16 %v437
        %v447 = vunpack.c.l.b16 %v438
        %v448 = vunpack.c.h.b16 %v438
        %v449 = vunpack.c.l.b16 %v439
        %v450 = vunpack.c.h.b16 %v439
        %v451 = vunpack.c.l.b16 %v440
        %v452 = vunpack.c.h.b16 %v440
        %v453 = vpack.c.b16 %v445, %v445
        %v454 = vpack.c.b16 %v446, %v446
        %v455 = vpack.c.b16 %v447, %v447
        %v456 = vpack.c.b16 %v448, %v448
        %v457 = vpack.c.b16 %v449, %v449
        %v458 = vpack.c.b16 %v450, %v450
        %v459 = vpack.c.b16 %v451, %v451
        %v460 = vpack.c.b16 %v452, %v452
        %461 = vrot.lane.b32.xlu0 %v453, 28
        %v462 = vpop.permute.xlu0 %461
        %463 = vrot.lane.b32.xlu0 %v454, 28
        %v464 = vpop.permute.xlu0 %463
        %465 = vrot.lane.b32.xlu0 %v455, 28
        %v466 = vpop.permute.xlu0 %465
        %467 = vrot.lane.b32.xlu0 %v456, 28
        %v468 = vpop.permute.xlu0 %467
        %469 = vrot.lane.b32.xlu0 %v457, 28
        %v470 = vpop.permute.xlu0 %469
        %471 = vrot.lane.b32.xlu0 %v458, 28
        %v472 = vpop.permute.xlu0 %471
        %473 = vrot.lane.b32.xlu0 %v459, 28
        %v474 = vpop.permute.xlu0 %473
        %475 = vrot.lane.b32.xlu0 %v460, 28
        %v476 = vpop.permute.xlu0 %475
        %vm477 = vcmask 228352
        %v478 = vsel %vm477, %v462, %v464
        %v479 = vsel %vm477, %v464, %v466
        %v480 = vsel %vm477, %v466, %v468
        %v481 = vsel %vm477, %v468, %v470
        %v482 = vsel %vm477, %v470, %v472
        %v483 = vsel %vm477, %v472, %v474
        %v484 = vsel %vm477, %v474, %v476
        %492 = vst [vmem:[#allocation2 + $0x70] sm:$0xf] %v478
        %493 = vst [vmem:[#allocation2 + $0x78] sm:$0xf] %v479
        %494 = vst [vmem:[#allocation2 + $0x80] sm:$0xf] %v480
        %495 = vst [vmem:[#allocation2 + $0x88] sm:$0xf] %v481
        %496 = vst [vmem:[#allocation2 + $0x90] sm:$0xf] %v482
        %497 = vst [vmem:[#allocation2 + $0x98] sm:$0xf] %v483
        %498 = vst.msk [vmem:[#allocation2 + $0xa0] sm:$0xf] %vm258, %v484
        %v499 = vld [vmem:[%s178] sm:$0xff]
        %v500 = vld [vmem:[%s178 + $0x8] sm:$0xff]
        %v501 = vld [vmem:[%s178 + $0x10] sm:$0xff]
        %v502 = vld [vmem:[%s178 + $0x18] sm:$0xff]
        %v507 = vunpack.c.l.b16 %v499
        %v508 = vunpack.c.h.b16 %v499
        %v509 = vunpack.c.l.b16 %v500
        %v510 = vunpack.c.h.b16 %v500
        %v511 = vunpack.c.l.b16 %v501
        %v512 = vunpack.c.h.b16 %v501
        %v513 = vunpack.c.l.b16 %v502
        %v514 = vunpack.c.h.b16 %v502
        %v515 = vpack.c.b16 %v507, %v507
        %v516 = vpack.c.b16 %v508, %v508
        %v517 = vpack.c.b16 %v509, %v509
        %v518 = vpack.c.b16 %v510, %v510
        %v519 = vpack.c.b16 %v511, %v511
        %v520 = vpack.c.b16 %v512, %v512
        %v521 = vpack.c.b16 %v513, %v513
        %v522 = vpack.c.b16 %v514, %v514
        %523 = vrot.lane.b32.xlu0 %v515, 27
        %v524 = vpop.permute.xlu0 %523
        %525 = vrot.lane.b32.xlu0 %v516, 27
        %v526 = vpop.permute.xlu0 %525
        %527 = vrot.lane.b32.xlu0 %v517, 27
        %v528 = vpop.permute.xlu0 %527
        %529 = vrot.lane.b32.xlu0 %v518, 27
        %v530 = vpop.permute.xlu0 %529
        %531 = vrot.lane.b32.xlu0 %v519, 27
        %v532 = vpop.permute.xlu0 %531
        %533 = vrot.lane.b32.xlu0 %v520, 27
        %v534 = vpop.permute.xlu0 %533
        %535 = vrot.lane.b32.xlu0 %v521, 27
        %v536 = vpop.permute.xlu0 %535
        %537 = vrot.lane.b32.xlu0 %v522, 27
        %v538 = vpop.permute.xlu0 %537
        %vm539 = vcmask 220160
        %v540 = vsel %vm539, %v524, %v526
        %v541 = vsel %vm539, %v526, %v528
        %v542 = vsel %vm539, %v528, %v530
        %v543 = vsel %vm539, %v530, %v532
        %v544 = vsel %vm539, %v532, %v534
        %v545 = vsel %vm539, %v534, %v536
        %v546 = vsel %vm539, %v536, %v538
        %554 = vst [vmem:[#allocation2 + $0x70] sm:$0xf0] %v540
        %555 = vst [vmem:[#allocation2 + $0x78] sm:$0xf0] %v541
        %556 = vst [vmem:[#allocation2 + $0x80] sm:$0xf0] %v542
        %557 = vst [vmem:[#allocation2 + $0x88] sm:$0xf0] %v543
        %558 = vst [vmem:[#allocation2 + $0x90] sm:$0xf0] %v544
        %559 = vst [vmem:[#allocation2 + $0x98] sm:$0xf0] %v545
        %560 = vst.msk [vmem:[#allocation2 + $0xa0] sm:$0xf0] %vm316, %v546
        %v561 = vld [vmem:[%s178] sm:$0xff]
        %v562 = vld [vmem:[%s178 + $0x8] sm:$0xff]
        %v563 = vld [vmem:[%s178 + $0x10] sm:$0xff]
        %v564 = vld [vmem:[%s178 + $0x18] sm:$0xff]
        %v569 = vunpack.c.l.b16 %v561
        %v570 = vunpack.c.h.b16 %v561
        %v571 = vunpack.c.l.b16 %v562
        %v572 = vunpack.c.h.b16 %v562
        %v573 = vunpack.c.l.b16 %v563
        %v574 = vunpack.c.h.b16 %v563
        %v575 = vunpack.c.l.b16 %v564
        %v576 = vunpack.c.h.b16 %v564
        %v577 = vpack.c.b16 %v569, %v569
        %v578 = vpack.c.b16 %v570, %v570
        %v579 = vpack.c.b16 %v571, %v571
        %v580 = vpack.c.b16 %v572, %v572
        %v581 = vpack.c.b16 %v573, %v573
        %v582 = vpack.c.b16 %v574, %v574
        %v583 = vpack.c.b16 %v575, %v575
        %v584 = vpack.c.b16 %v576, %v576
        %585 = vrot.lane.b32.xlu0 %v577, 19
        %v586 = vpop.permute.xlu0 %585
        %587 = vrot.lane.b32.xlu0 %v578, 19
        %v588 = vpop.permute.xlu0 %587
        %589 = vrot.lane.b32.xlu0 %v579, 19
        %v590 = vpop.permute.xlu0 %589
        %591 = vrot.lane.b32.xlu0 %v580, 19
        %v592 = vpop.permute.xlu0 %591
        %593 = vrot.lane.b32.xlu0 %v581, 19
        %v594 = vpop.permute.xlu0 %593
        %595 = vrot.lane.b32.xlu0 %v582, 19
        %v596 = vpop.permute.xlu0 %595
        %597 = vrot.lane.b32.xlu0 %v583, 19
        %v598 = vpop.permute.xlu0 %597
        %599 = vrot.lane.b32.xlu0 %v584, 19
        %v600 = vpop.permute.xlu0 %599
        %vm601 = vcmask 154624
        %v602 = vsel %vm601, %v586, %v588
        %v603 = vsel %vm601, %v588, %v590
        %v604 = vsel %vm601, %v590, %v592
        %v605 = vsel %vm601, %v592, %v594
        %v606 = vsel %vm601, %v594, %v596
        %v607 = vsel %vm601, %v596, %v598
        %v608 = vsel %vm601, %v598, %v600
        %616 = vst [vmem:[#allocation2 + $0xa8] sm:$0xf] %v602
        %617 = vst [vmem:[#allocation2 + $0xb0] sm:$0xf] %v603
        %618 = vst [vmem:[#allocation2 + $0xb8] sm:$0xf] %v604
        %619 = vst [vmem:[#allocation2 + $0xc0] sm:$0xf] %v605
        %620 = vst [vmem:[#allocation2 + $0xc8] sm:$0xf] %v606
        %621 = vst [vmem:[#allocation2 + $0xd0] sm:$0xf] %v607
        %622 = vst.msk [vmem:[#allocation2 + $0xd8] sm:$0xf] %vm258, %v608
        %v623 = vld [vmem:[%s178] sm:$0xff]
        %v624 = vld [vmem:[%s178 + $0x8] sm:$0xff]
        %v625 = vld [vmem:[%s178 + $0x10] sm:$0xff]
        %v626 = vld [vmem:[%s178 + $0x18] sm:$0xff]
        %v631 = vunpack.c.l.b16 %v623
        %v632 = vunpack.c.h.b16 %v623
        %v633 = vunpack.c.l.b16 %v624
        %v634 = vunpack.c.h.b16 %v624
        %v635 = vunpack.c.l.b16 %v625
        %v636 = vunpack.c.h.b16 %v625
        %v637 = vunpack.c.l.b16 %v626
        %v638 = vunpack.c.h.b16 %v626
        %v639 = vpack.c.b16 %v631, %v631
        %v640 = vpack.c.b16 %v632, %v632
        %v641 = vpack.c.b16 %v633, %v633
        %v642 = vpack.c.b16 %v634, %v634
        %v643 = vpack.c.b16 %v635, %v635
        %v644 = vpack.c.b16 %v636, %v636
        %v645 = vpack.c.b16 %v637, %v637
        %v646 = vpack.c.b16 %v638, %v638
        %647 = vrot.lane.b32.xlu0 %v639, 18
        %v648 = vpop.permute.xlu0 %647
        %649 = vrot.lane.b32.xlu0 %v640, 18
        %v650 = vpop.permute.xlu0 %649
        %651 = vrot.lane.b32.xlu0 %v641, 18
        %v652 = vpop.permute.xlu0 %651
        %653 = vrot.lane.b32.xlu0 %v642, 18
        %v654 = vpop.permute.xlu0 %653
        %655 = vrot.lane.b32.xlu0 %v643, 18
        %v656 = vpop.permute.xlu0 %655
        %657 = vrot.lane.b32.xlu0 %v644, 18
        %v658 = vpop.permute.xlu0 %657
        %659 = vrot.lane.b32.xlu0 %v645, 18
        %v660 = vpop.permute.xlu0 %659
        %661 = vrot.lane.b32.xlu0 %v646, 18
        %v662 = vpop.permute.xlu0 %661
        %vm663 = vcmask 146432
        %v664 = vsel %vm663, %v648, %v650
        %v665 = vsel %vm663, %v650, %v652
        %v666 = vsel %vm663, %v652, %v654
        %v667 = vsel %vm663, %v654, %v656
        %v668 = vsel %vm663, %v656, %v658
        %v669 = vsel %vm663, %v658, %v660
        %v670 = vsel %vm663, %v660, %v662
        %678 = vst [vmem:[#allocation2 + $0xa8] sm:$0xf0] %v664
        %679 = vst [vmem:[#allocation2 + $0xb0] sm:$0xf0] %v665
        %680 = vst [vmem:[#allocation2 + $0xb8] sm:$0xf0] %v666
        %681 = vst [vmem:[#allocation2 + $0xc0] sm:$0xf0] %v667
        %682 = vst [vmem:[#allocation2 + $0xc8] sm:$0xf0] %v668
        %683 = vst [vmem:[#allocation2 + $0xd0] sm:$0xf0] %v669
        %684 = vst.msk [vmem:[#allocation2 + $0xd8] sm:$0xf0] %vm316, %v670
        %v685 = vld [vmem:[%s178] sm:$0xff]
        %v686 = vld [vmem:[%s178 + $0x8] sm:$0xff]
        %v687 = vld [vmem:[%s178 + $0x10] sm:$0xff]
        %v688 = vld [vmem:[%s178 + $0x18] sm:$0xff]
        %v693 = vunpack.c.l.b16 %v685
        %v694 = vunpack.c.h.b16 %v685
        %v695 = vunpack.c.l.b16 %v686
        %v696 = vunpack.c.h.b16 %v686
        %v697 = vunpack.c.l.b16 %v687
        %v698 = vunpack.c.h.b16 %v687
        %v699 = vunpack.c.l.b16 %v688
        %v700 = vunpack.c.h.b16 %v688
        %v701 = vpack.c.b16 %v693, %v693
        %v702 = vpack.c.b16 %v694, %v694
        %v703 = vpack.c.b16 %v695, %v695
        %v704 = vpack.c.b16 %v696, %v696
        %v705 = vpack.c.b16 %v697, %v697
        %v706 = vpack.c.b16 %v698, %v698
        %v707 = vpack.c.b16 %v699, %v699
        %v708 = vpack.c.b16 %v700, %v700
        %709 = vrot.lane.b32.xlu0 %v701, 17
        %v710 = vpop.permute.xlu0 %709
        %711 = vrot.lane.b32.xlu0 %v702, 17
        %v712 = vpop.permute.xlu0 %711
        %713 = vrot.lane.b32.xlu0 %v703, 17
        %v714 = vpop.permute.xlu0 %713
        %715 = vrot.lane.b32.xlu0 %v704, 17
        %v716 = vpop.permute.xlu0 %715
        %717 = vrot.lane.b32.xlu0 %v705, 17
        %v718 = vpop.permute.xlu0 %717
        %719 = vrot.lane.b32.xlu0 %v706, 17
        %v720 = vpop.permute.xlu0 %719
        %721 = vrot.lane.b32.xlu0 %v707, 17
        %v722 = vpop.permute.xlu0 %721
        %723 = vrot.lane.b32.xlu0 %v708, 17
        %v724 = vpop.permute.xlu0 %723
        %vm725 = vcmask 138240
        %v726 = vsel %vm725, %v710, %v712
        %v727 = vsel %vm725, %v712, %v714
        %v728 = vsel %vm725, %v714, %v716
        %v729 = vsel %vm725, %v716, %v718
        %v730 = vsel %vm725, %v718, %v720
        %v731 = vsel %vm725, %v720, %v722
        %v732 = vsel %vm725, %v722, %v724
        %740 = vst [vmem:[#allocation2 + $0xe0] sm:$0xf] %v726
        %741 = vst [vmem:[#allocation2 + $0xe8] sm:$0xf] %v727
        %742 = vst [vmem:[#allocation2 + $0xf0] sm:$0xf] %v728
        %743 = vst [vmem:[#allocation2 + $0xf8] sm:$0xf] %v729
        %744 = vst [vmem:[#allocation2 + $0x100] sm:$0xf] %v730
        %745 = vst [vmem:[#allocation2 + $0x108] sm:$0xf] %v731
        %746 = vst.msk [vmem:[#allocation2 + $0x110] sm:$0xf] %vm258, %v732
        %v747 = vld [vmem:[%s178 + $0x4] sm:$0xff]
        %v748 = vld [vmem:[%s178 + $0xc] sm:$0xff]
        %v749 = vld [vmem:[%s178 + $0x14] sm:$0xff]
        %v750 = vld [vmem:[%s178 + $0x1c] sm:$0xf]
        %v755 = vunpack.c.l.b16 %v747
        %v756 = vunpack.c.h.b16 %v747
        %v757 = vunpack.c.l.b16 %v748
        %v758 = vunpack.c.h.b16 %v748
        %v759 = vunpack.c.l.b16 %v749
        %v760 = vunpack.c.h.b16 %v749
        %v761 = vunpack.c.l.b16 %v750
        %v762 = vpack.c.b16 %v755, %v755
        %v763 = vpack.c.b16 %v756, %v756
        %v764 = vpack.c.b16 %v757, %v757
        %v765 = vpack.c.b16 %v758, %v758
        %v766 = vpack.c.b16 %v759, %v759
        %v767 = vpack.c.b16 %v760, %v760
        %v768 = vpack.c.b16 %v761, %v761
        %769 = vrot.lane.b32.xlu0 %v762, 67
        %v770 = vpop.permute.xlu0 %769
        %771 = vrot.lane.b32.xlu0 %v763, 67
        %v772 = vpop.permute.xlu0 %771
        %773 = vrot.lane.b32.xlu0 %v764, 67
        %v774 = vpop.permute.xlu0 %773
        %775 = vrot.lane.b32.xlu0 %v765, 67
        %v776 = vpop.permute.xlu0 %775
        %777 = vrot.lane.b32.xlu0 %v766, 67
        %v778 = vpop.permute.xlu0 %777
        %779 = vrot.lane.b32.xlu0 %v767, 67
        %v780 = vpop.permute.xlu0 %779
        %781 = vrot.lane.b32.xlu0 %v768, 67
        %v782 = vpop.permute.xlu0 %781
        %vm783 = vcmask 547840
        %v784 = vsel %vm783, %v770, %v772
        %v785 = vsel %vm783, %v772, %v774
        %v786 = vsel %vm783, %v774, %v776
        %v787 = vsel %vm783, %v776, %v778
        %v788 = vsel %vm783, %v778, %v780
        %v789 = vsel %vm783, %v780, %v782
        %797 = vst [vmem:[#allocation2 + $0xe0] sm:$0xf0] %v784
        %798 = vst [vmem:[#allocation2 + $0xe8] sm:$0xf0] %v785
        %799 = vst [vmem:[#allocation2 + $0xf0] sm:$0xf0] %v786
        %800 = vst [vmem:[#allocation2 + $0xf8] sm:$0xf0] %v787
        %801 = vst [vmem:[#allocation2 + $0x100] sm:$0xf0] %v788
        %802 = vst [vmem:[#allocation2 + $0x108] sm:$0xf0] %v789
        %803 = vst.msk [vmem:[#allocation2 + $0x110] sm:$0xf0] %vm316, %v782
        %v804 = vld [vmem:[%s178 + $0x4] sm:$0xff]
        %v805 = vld [vmem:[%s178 + $0xc] sm:$0xff]
        %v806 = vld [vmem:[%s178 + $0x14] sm:$0xff]
        %v807 = vld [vmem:[%s178 + $0x1c] sm:$0xf]
        %v812 = vunpack.c.l.b16 %v804
        %v813 = vunpack.c.h.b16 %v804
        %v814 = vunpack.c.l.b16 %v805
        %v815 = vunpack.c.h.b16 %v805
        %v816 = vunpack.c.l.b16 %v806
        %v817 = vunpack.c.h.b16 %v806
        %v818 = vunpack.c.l.b16 %v807
        %v819 = vpack.c.b16 %v812, %v812
        %v820 = vpack.c.b16 %v813, %v813
        %v821 = vpack.c.b16 %v814, %v814
        %v822 = vpack.c.b16 %v815, %v815
        %v823 = vpack.c.b16 %v816, %v816
        %v824 = vpack.c.b16 %v817, %v817
        %v825 = vpack.c.b16 %v818, %v818
        %826 = vrot.lane.b32.xlu0 %v819, 66
        %v827 = vpop.permute.xlu0 %826
        %828 = vrot.lane.b32.xlu0 %v820, 66
        %v829 = vpop.permute.xlu0 %828
        %830 = vrot.lane.b32.xlu0 %v821, 66
        %v831 = vpop.permute.xlu0 %830
        %832 = vrot.lane.b32.xlu0 %v822, 66
        %v833 = vpop.permute.xlu0 %832
        %834 = vrot.lane.b32.xlu0 %v823, 66
        %v835 = vpop.permute.xlu0 %834
        %836 = vrot.lane.b32.xlu0 %v824, 66
        %v837 = vpop.permute.xlu0 %836
        %838 = vrot.lane.b32.xlu0 %v825, 66
        %v839 = vpop.permute.xlu0 %838
        %vm840 = vcmask 539648
        %v841 = vsel %vm840, %v827, %v829
        %v842 = vsel %vm840, %v829, %v831
        %v843 = vsel %vm840, %v831, %v833
        %v844 = vsel %vm840, %v833, %v835
        %v845 = vsel %vm840, %v835, %v837
        %v846 = vsel %vm840, %v837, %v839
        %854 = vst [vmem:[#allocation2 + $0x118] sm:$0xf] %v841
        %855 = vst [vmem:[#allocation2 + $0x120] sm:$0xf] %v842
        %856 = vst [vmem:[#allocation2 + $0x128] sm:$0xf] %v843
        %857 = vst [vmem:[#allocation2 + $0x130] sm:$0xf] %v844
        %858 = vst [vmem:[#allocation2 + $0x138] sm:$0xf] %v845
        %859 = vst [vmem:[#allocation2 + $0x140] sm:$0xf] %v846
        %860 = vst.msk [vmem:[#allocation2 + $0x148] sm:$0xf] %vm258, %v839
        %v861 = vld [vmem:[%s178 + $0x4] sm:$0xff]
        %v862 = vld [vmem:[%s178 + $0xc] sm:$0xff]
        %v863 = vld [vmem:[%s178 + $0x14] sm:$0xff]
        %v864 = vld [vmem:[%s178 + $0x1c] sm:$0xf]
        %v869 = vunpack.c.l.b16 %v861
        %v870 = vunpack.c.h.b16 %v861
        %v871 = vunpack.c.l.b16 %v862
        %v872 = vunpack.c.h.b16 %v862
        %v873 = vunpack.c.l.b16 %v863
        %v874 = vunpack.c.h.b16 %v863
        %v875 = vunpack.c.l.b16 %v864
        %v876 = vpack.c.b16 %v869, %v869
        %v877 = vpack.c.b16 %v870, %v870
        %v878 = vpack.c.b16 %v871, %v871
        %v879 = vpack.c.b16 %v872, %v872
        %v880 = vpack.c.b16 %v873, %v873
        %v881 = vpack.c.b16 %v874, %v874
        %v882 = vpack.c.b16 %v875, %v875
        %883 = vrot.lane.b32.xlu0 %v876, 65
        %v884 = vpop.permute.xlu0 %883
        %885 = vrot.lane.b32.xlu0 %v877, 65
        %v886 = vpop.permute.xlu0 %885
        %887 = vrot.lane.b32.xlu0 %v878, 65
        %v888 = vpop.permute.xlu0 %887
        %889 = vrot.lane.b32.xlu0 %v879, 65
        %v890 = vpop.permute.xlu0 %889
        %891 = vrot.lane.b32.xlu0 %v880, 65
        %v892 = vpop.permute.xlu0 %891
        %893 = vrot.lane.b32.xlu0 %v881, 65
        %v894 = vpop.permute.xlu0 %893
        %895 = vrot.lane.b32.xlu0 %v882, 65
        %v896 = vpop.permute.xlu0 %895
        %vm897 = vcmask 531456
        %v898 = vsel %vm897, %v884, %v886
        %v899 = vsel %vm897, %v886, %v888
        %v900 = vsel %vm897, %v888, %v890
        %v901 = vsel %vm897, %v890, %v892
        %v902 = vsel %vm897, %v892, %v894
        %v903 = vsel %vm897, %v894, %v896
        %911 = vst [vmem:[#allocation2 + $0x118] sm:$0xf0] %v898
        %912 = vst [vmem:[#allocation2 + $0x120] sm:$0xf0] %v899
        %913 = vst [vmem:[#allocation2 + $0x128] sm:$0xf0] %v900
        %914 = vst [vmem:[#allocation2 + $0x130] sm:$0xf0] %v901
        %915 = vst [vmem:[#allocation2 + $0x138] sm:$0xf0] %v902
        %916 = vst [vmem:[#allocation2 + $0x140] sm:$0xf0] %v903
        %917 = vst.msk [vmem:[#allocation2 + $0x148] sm:$0xf0] %vm316, %v896
        %v918 = vld [vmem:[%s178 + $0x4] sm:$0xff]
        %v919 = vld [vmem:[%s178 + $0xc] sm:$0xff]
        %v920 = vld [vmem:[%s178 + $0x14] sm:$0xff]
        %v921 = vld [vmem:[%s178 + $0x1c] sm:$0xf]
        %v926 = vunpack.c.l.b16 %v918
        %v927 = vunpack.c.h.b16 %v918
        %v928 = vunpack.c.l.b16 %v919
        %v929 = vunpack.c.h.b16 %v919
        %v930 = vunpack.c.l.b16 %v920
        %v931 = vunpack.c.h.b16 %v920
        %v932 = vunpack.c.l.b16 %v921
        %v933 = vpack.c.b16 %v926, %v926
        %v934 = vpack.c.b16 %v927, %v927
        %v935 = vpack.c.b16 %v928, %v928
        %v936 = vpack.c.b16 %v929, %v929
        %v937 = vpack.c.b16 %v930, %v930
        %v938 = vpack.c.b16 %v931, %v931
        %v939 = vpack.c.b16 %v932, %v932
        %940 = vrot.lane.b32.xlu0 %v933, 57
        %v941 = vpop.permute.xlu0 %940
        %942 = vrot.lane.b32.xlu0 %v934, 57
        %v943 = vpop.permute.xlu0 %942
        %944 = vrot.lane.b32.xlu0 %v935, 57
        %v945 = vpop.permute.xlu0 %944
        %946 = vrot.lane.b32.xlu0 %v936, 57
        %v947 = vpop.permute.xlu0 %946
        %948 = vrot.lane.b32.xlu0 %v937, 57
        %v949 = vpop.permute.xlu0 %948
        %950 = vrot.lane.b32.xlu0 %v938, 57
        %v951 = vpop.permute.xlu0 %950
        %952 = vrot.lane.b32.xlu0 %v939, 57
        %v953 = vpop.permute.xlu0 %952
        %vm954 = vcmask 465920
        %v955 = vsel %vm954, %v941, %v943
        %v956 = vsel %vm954, %v943, %v945
        %v957 = vsel %vm954, %v945, %v947
        %v958 = vsel %vm954, %v947, %v949
        %v959 = vsel %vm954, %v949, %v951
        %v960 = vsel %vm954, %v951, %v953
        %968 = vst [vmem:[#allocation2 + $0x150] sm:$0xf] %v955
        %969 = vst [vmem:[#allocation2 + $0x158] sm:$0xf] %v956
        %970 = vst [vmem:[#allocation2 + $0x160] sm:$0xf] %v957
        %971 = vst [vmem:[#allocation2 + $0x168] sm:$0xf] %v958
        %972 = vst [vmem:[#allocation2 + $0x170] sm:$0xf] %v959
        %973 = vst [vmem:[#allocation2 + $0x178] sm:$0xf] %v960
        %974 = vst.msk [vmem:[#allocation2 + $0x180] sm:$0xf] %vm258, %v953
        %v975 = vld [vmem:[%s178 + $0x4] sm:$0xff]
        %v976 = vld [vmem:[%s178 + $0xc] sm:$0xff]
        %v977 = vld [vmem:[%s178 + $0x14] sm:$0xff]
        %v978 = vld [vmem:[%s178 + $0x1c] sm:$0xf]
        %v983 = vunpack.c.l.b16 %v975
        %v984 = vunpack.c.h.b16 %v975
        %v985 = vunpack.c.l.b16 %v976
        %v986 = vunpack.c.h.b16 %v976
        %v987 = vunpack.c.l.b16 %v977
        %v988 = vunpack.c.h.b16 %v977
        %v989 = vunpack.c.l.b16 %v978
        %v990 = vpack.c.b16 %v983, %v983
        %v991 = vpack.c.b16 %v984, %v984
        %v992 = vpack.c.b16 %v985, %v985
        %v993 = vpack.c.b16 %v986, %v986
        %v994 = vpack.c.b16 %v987, %v987
        %v995 = vpack.c.b16 %v988, %v988
        %v996 = vpack.c.b16 %v989, %v989
        %997 = vrot.lane.b32.xlu0 %v990, 56
        %v998 = vpop.permute.xlu0 %997
        %999 = vrot.lane.b32.xlu0 %v991, 56
        %v1000 = vpop.permute.xlu0 %999
        %1001 = vrot.lane.b32.xlu0 %v992, 56
        %v1002 = vpop.permute.xlu0 %1001
        %1003 = vrot.lane.b32.xlu0 %v993, 56
        %v1004 = vpop.permute.xlu0 %1003
        %1005 = vrot.lane.b32.xlu0 %v994, 56
        %v1006 = vpop.permute.xlu0 %1005
        %1007 = vrot.lane.b32.xlu0 %v995, 56
        %v1008 = vpop.permute.xlu0 %1007
        %1009 = vrot.lane.b32.xlu0 %v996, 56
        %v1010 = vpop.permute.xlu0 %1009
        %vm1011 = vcmask 457728
        %v1012 = vsel %vm1011, %v998, %v1000
        %v1013 = vsel %vm1011, %v1000, %v1002
        %v1014 = vsel %vm1011, %v1002, %v1004
        %v1015 = vsel %vm1011, %v1004, %v1006
        %v1016 = vsel %vm1011, %v1006, %v1008
        %v1017 = vsel %vm1011, %v1008, %v1010
        %1025 = vst [vmem:[#allocation2 + $0x150] sm:$0xf0] %v1012
        %1026 = vst [vmem:[#allocation2 + $0x158] sm:$0xf0] %v1013
        %1027 = vst [vmem:[#allocation2 + $0x160] sm:$0xf0] %v1014
        %1028 = vst [vmem:[#allocation2 + $0x168] sm:$0xf0] %v1015
        %1029 = vst [vmem:[#allocation2 + $0x170] sm:$0xf0] %v1016
        %1030 = vst [vmem:[#allocation2 + $0x178] sm:$0xf0] %v1017
        %1031 = vst.msk [vmem:[#allocation2 + $0x180] sm:$0xf0] %vm316, %v1010
        %v1032 = vld [vmem:[%s178 + $0x4] sm:$0xff]
        %v1033 = vld [vmem:[%s178 + $0xc] sm:$0xff]
        %v1034 = vld [vmem:[%s178 + $0x14] sm:$0xff]
        %v1035 = vld [vmem:[%s178 + $0x1c] sm:$0xf]
        %v1040 = vunpack.c.l.b16 %v1032
        %v1041 = vunpack.c.h.b16 %v1032
        %v1042 = vunpack.c.l.b16 %v1033
        %v1043 = vunpack.c.h.b16 %v1033
        %v1044 = vunpack.c.l.b16 %v1034
        %v1045 = vunpack.c.h.b16 %v1034
        %v1046 = vunpack.c.l.b16 %v1035
        %v1047 = vpack.c.b16 %v1040, %v1040
        %v1048 = vpack.c.b16 %v1041, %v1041
        %v1049 = vpack.c.b16 %v1042, %v1042
        %v1050 = vpack.c.b16 %v1043, %v1043
        %v1051 = vpack.c.b16 %v1044, %v1044
        %v1052 = vpack.c.b16 %v1045, %v1045
        %v1053 = vpack.c.b16 %v1046, %v1046
        %1054 = vrot.lane.b32.xlu0 %v1047, 55
        %v1055 = vpop.permute.xlu0 %1054
        %1056 = vrot.lane.b32.xlu0 %v1048, 55
        %v1057 = vpop.permute.xlu0 %1056
        %1058 = vrot.lane.b32.xlu0 %v1049, 55
        %v1059 = vpop.permute.xlu0 %1058
        %1060 = vrot.lane.b32.xlu0 %v1050, 55
        %v1061 = vpop.permute.xlu0 %1060
        %1062 = vrot.lane.b32.xlu0 %v1051, 55
        %v1063 = vpop.permute.xlu0 %1062
        %1064 = vrot.lane.b32.xlu0 %v1052, 55
        %v1065 = vpop.permute.xlu0 %1064
        %1066 = vrot.lane.b32.xlu0 %v1053, 55
        %v1067 = vpop.permute.xlu0 %1066
        %vm1068 = vcmask 449536
        %v1069 = vsel %vm1068, %v1055, %v1057
        %v1070 = vsel %vm1068, %v1057, %v1059
        %v1071 = vsel %vm1068, %v1059, %v1061
        %v1072 = vsel %vm1068, %v1061, %v1063
        %v1073 = vsel %vm1068, %v1063, %v1065
        %v1074 = vsel %vm1068, %v1065, %v1067
        %1082 = vst [vmem:[#allocation2 + $0x188] sm:$0xf] %v1069
        %1083 = vst [vmem:[#allocation2 + $0x190] sm:$0xf] %v1070
        %1084 = vst [vmem:[#allocation2 + $0x198] sm:$0xf] %v1071
        %1085 = vst [vmem:[#allocation2 + $0x1a0] sm:$0xf] %v1072
        %1086 = vst [vmem:[#allocation2 + $0x1a8] sm:$0xf] %v1073
        %1087 = vst [vmem:[#allocation2 + $0x1b0] sm:$0xf] %v1074
        %1088 = vst.msk [vmem:[#allocation2 + $0x1b8] sm:$0xf] %vm258, %v1067
        %v1089 = vld [vmem:[%s178 + $0x4] sm:$0xff]
        %v1090 = vld [vmem:[%s178 + $0xc] sm:$0xff]
        %v1091 = vld [vmem:[%s178 + $0x14] sm:$0xff]
        %v1092 = vld [vmem:[%s178 + $0x1c] sm:$0xf]
        %v1097 = vunpack.c.l.b16 %v1089
        %v1098 = vunpack.c.h.b16 %v1089
        %v1099 = vunpack.c.l.b16 %v1090
        %v1100 = vunpack.c.h.b16 %v1090
        %v1101 = vunpack.c.l.b16 %v1091
        %v1102 = vunpack.c.h.b16 %v1091
        %v1103 = vunpack.c.l.b16 %v1092
        %v1104 = vpack.c.b16 %v1097, %v1097
        %v1105 = vpack.c.b16 %v1098, %v1098
        %v1106 = vpack.c.b16 %v1099, %v1099
        %v1107 = vpack.c.b16 %v1100, %v1100
        %v1108 = vpack.c.b16 %v1101, %v1101
        %v1109 = vpack.c.b16 %v1102, %v1102
        %v1110 = vpack.c.b16 %v1103, %v1103
        %1111 = vrot.lane.b32.xlu0 %v1104, 47
        %v1112 = vpop.permute.xlu0 %1111
        %1113 = vrot.lane.b32.xlu0 %v1105, 47
        %v1114 = vpop.permute.xlu0 %1113
        %1115 = vrot.lane.b32.xlu0 %v1106, 47
        %v1116 = vpop.permute.xlu0 %1115
        %1117 = vrot.lane.b32.xlu0 %v1107, 47
        %v1118 = vpop.permute.xlu0 %1117
        %1119 = vrot.lane.b32.xlu0 %v1108, 47
        %v1120 = vpop.permute.xlu0 %1119
        %1121 = vrot.lane.b32.xlu0 %v1109, 47
        %v1122 = vpop.permute.xlu0 %1121
        %1123 = vrot.lane.b32.xlu0 %v1110, 47
        %v1124 = vpop.permute.xlu0 %1123
        %vm1125 = vcmask 384000
        %v1126 = vsel %vm1125, %v1112, %v1114
        %v1127 = vsel %vm1125, %v1114, %v1116
        %v1128 = vsel %vm1125, %v1116, %v1118
        %v1129 = vsel %vm1125, %v1118, %v1120
        %v1130 = vsel %vm1125, %v1120, %v1122
        %v1131 = vsel %vm1125, %v1122, %v1124
        %1139 = vst [vmem:[#allocation2 + $0x188] sm:$0xf0] %v1126
        %1140 = vst [vmem:[#allocation2 + $0x190] sm:$0xf0] %v1127
        %1141 = vst [vmem:[#allocation2 + $0x198] sm:$0xf0] %v1128
        %1142 = vst [vmem:[#allocation2 + $0x1a0] sm:$0xf0] %v1129
        %1143 = vst [vmem:[#allocation2 + $0x1a8] sm:$0xf0] %v1130
        %1144 = vst [vmem:[#allocation2 + $0x1b0] sm:$0xf0] %v1131
        %1145 = vst.msk [vmem:[#allocation2 + $0x1b8] sm:$0xf0] %vm316, %v1124
        %v1146 = vld [vmem:[%s178 + $0x4] sm:$0xff]
        %v1147 = vld [vmem:[%s178 + $0xc] sm:$0xff]
        %v1148 = vld [vmem:[%s178 + $0x14] sm:$0xff]
        %v1149 = vld [vmem:[%s178 + $0x1c] sm:$0xf]
        %v1154 = vunpack.c.l.b16 %v1146
        %v1155 = vunpack.c.h.b16 %v1146
        %v1156 = vunpack.c.l.b16 %v1147
        %v1157 = vunpack.c.h.b16 %v1147
        %v1158 = vunpack.c.l.b16 %v1148
        %v1159 = vunpack.c.h.b16 %v1148
        %v1160 = vunpack.c.l.b16 %v1149
        %v1161 = vpack.c.b16 %v1154, %v1154
        %v1162 = vpack.c.b16 %v1155, %v1155
        %v1163 = vpack.c.b16 %v1156, %v1156
        %v1164 = vpack.c.b16 %v1157, %v1157
        %v1165 = vpack.c.b16 %v1158, %v1158
        %v1166 = vpack.c.b16 %v1159, %v1159
        %v1167 = vpack.c.b16 %v1160, %v1160
        %1168 = vrot.lane.b32.xlu0 %v1161, 46
        %v1169 = vpop.permute.xlu0 %1168
        %1170 = vrot.lane.b32.xlu0 %v1162, 46
        %v1171 = vpop.permute.xlu0 %1170
        %1172 = vrot.lane.b32.xlu0 %v1163, 46
        %v1173 = vpop.permute.xlu0 %1172
        %1174 = vrot.lane.b32.xlu0 %v1164, 46
        %v1175 = vpop.permute.xlu0 %1174
        %1176 = vrot.lane.b32.xlu0 %v1165, 46
        %v1177 = vpop.permute.xlu0 %1176
        %1178 = vrot.lane.b32.xlu0 %v1166, 46
        %v1179 = vpop.permute.xlu0 %1178
        %1180 = vrot.lane.b32.xlu0 %v1167, 46
        %v1181 = vpop.permute.xlu0 %1180
        %vm1182 = vcmask 375808
        %v1183 = vsel %vm1182, %v1169, %v1171
        %v1184 = vsel %vm1182, %v1171, %v1173
        %v1185 = vsel %vm1182, %v1173, %v1175
        %v1186 = vsel %vm1182, %v1175, %v1177
        %v1187 = vsel %vm1182, %v1177, %v1179
        %v1188 = vsel %vm1182, %v1179, %v1181
        %1196 = vst [vmem:[#allocation2 + $0x1c0] sm:$0xf] %v1183
        %1197 = vst [vmem:[#allocation2 + $0x1c8] sm:$0xf] %v1184
        %1198 = vst [vmem:[#allocation2 + $0x1d0] sm:$0xf] %v1185
        %1199 = vst [vmem:[#allocation2 + $0x1d8] sm:$0xf] %v1186
        %1200 = vst [vmem:[#allocation2 + $0x1e0] sm:$0xf] %v1187
        %1201 = vst [vmem:[#allocation2 + $0x1e8] sm:$0xf] %v1188
        %1202 = vst.msk [vmem:[#allocation2 + $0x1f0] sm:$0xf] %vm258, %v1181
        %v1203 = vld [vmem:[%s178 + $0x4] sm:$0xff]
        %v1204 = vld [vmem:[%s178 + $0xc] sm:$0xff]
        %v1205 = vld [vmem:[%s178 + $0x14] sm:$0xff]
        %v1206 = vld [vmem:[%s178 + $0x1c] sm:$0xf]
        %v1211 = vunpack.c.l.b16 %v1203
        %v1212 = vunpack.c.h.b16 %v1203
        %v1213 = vunpack.c.l.b16 %v1204
        %v1214 = vunpack.c.h.b16 %v1204
        %v1215 = vunpack.c.l.b16 %v1205
        %v1216 = vunpack.c.h.b16 %v1205
        %v1217 = vunpack.c.l.b16 %v1206
        %v1218 = vpack.c.b16 %v1211, %v1211
        %v1219 = vpack.c.b16 %v1212, %v1212
        %v1220 = vpack.c.b16 %v1213, %v1213
        %v1221 = vpack.c.b16 %v1214, %v1214
        %v1222 = vpack.c.b16 %v1215, %v1215
        %v1223 = vpack.c.b16 %v1216, %v1216
        %v1224 = vpack.c.b16 %v1217, %v1217
        %1225 = vrot.lane.b32.xlu0 %v1218, 45
        %v1226 = vpop.permute.xlu0 %1225
        %1227 = vrot.lane.b32.xlu0 %v1219, 45
        %v1228 = vpop.permute.xlu0 %1227
        %1229 = vrot.lane.b32.xlu0 %v1220, 45
        %v1230 = vpop.permute.xlu0 %1229
        %1231 = vrot.lane.b32.xlu0 %v1221, 45
        %v1232 = vpop.permute.xlu0 %1231
        %1233 = vrot.lane.b32.xlu0 %v1222, 45
        %v1234 = vpop.permute.xlu0 %1233
        %1235 = vrot.lane.b32.xlu0 %v1223, 45
        %v1236 = vpop.permute.xlu0 %1235
        %1237 = vrot.lane.b32.xlu0 %v1224, 45
        %v1238 = vpop.permute.xlu0 %1237
        %vm1239 = vcmask 367616
        %v1240 = vsel %vm1239, %v1226, %v1228
        %v1241 = vsel %vm1239, %v1228, %v1230
        %v1242 = vsel %vm1239, %v1230, %v1232
        %v1243 = vsel %vm1239, %v1232, %v1234
        %v1244 = vsel %vm1239, %v1234, %v1236
        %v1245 = vsel %vm1239, %v1236, %v1238
        %1253 = vst [vmem:[#allocation2 + $0x1c0] sm:$0xf0] %v1240
        %1254 = vst [vmem:[#allocation2 + $0x1c8] sm:$0xf0] %v1241
        %1255 = vst [vmem:[#allocation2 + $0x1d0] sm:$0xf0] %v1242
        %1256 = vst [vmem:[#allocation2 + $0x1d8] sm:$0xf0] %v1243
        %1257 = vst [vmem:[#allocation2 + $0x1e0] sm:$0xf0] %v1244
        %1258 = vst [vmem:[#allocation2 + $0x1e8] sm:$0xf0] %v1245
        %1259 = vst.msk [vmem:[#allocation2 + $0x1f0] sm:$0xf0] %vm316, %v1238
        %v1260 = vld [vmem:[%s178 + $0x8] sm:$0xff]
        %v1261 = vld [vmem:[%s178 + $0x10] sm:$0xff]
        %v1262 = vld [vmem:[%s178 + $0x18] sm:$0xff]
        %v1263 = vld [vmem:[%s178 + $0x20] sm:$0xf]
        %v1268 = vunpack.c.l.b16 %v1260
        %v1269 = vunpack.c.h.b16 %v1260
        %v1270 = vunpack.c.l.b16 %v1261
        %v1271 = vunpack.c.h.b16 %v1261
        %v1272 = vunpack.c.l.b16 %v1262
        %v1273 = vunpack.c.h.b16 %v1262
        %v1274 = vunpack.c.l.b16 %v1263
        %v1275 = vpack.c.b16 %v1268, %v1268
        %v1276 = vpack.c.b16 %v1269, %v1269
        %v1277 = vpack.c.b16 %v1270, %v1270
        %v1278 = vpack.c.b16 %v1271, %v1271
        %v1279 = vpack.c.b16 %v1272, %v1272
        %v1280 = vpack.c.b16 %v1273, %v1273
        %v1281 = vpack.c.b16 %v1274, %v1274
        %1282 = vrot.lane.b32.xlu0 %v1275, 95
        %v1283 = vpop.permute.xlu0 %1282
        %1284 = vrot.lane.b32.xlu0 %v1276, 95
        %v1285 = vpop.permute.xlu0 %1284
        %1286 = vrot.lane.b32.xlu0 %v1277, 95
        %v1287 = vpop.permute.xlu0 %1286
        %1288 = vrot.lane.b32.xlu0 %v1278, 95
        %v1289 = vpop.permute.xlu0 %1288
        %1290 = vrot.lane.b32.xlu0 %v1279, 95
        %v1291 = vpop.permute.xlu0 %1290
        %1292 = vrot.lane.b32.xlu0 %v1280, 95
        %v1293 = vpop.permute.xlu0 %1292
        %1294 = vrot.lane.b32.xlu0 %v1281, 95
        %v1295 = vpop.permute.xlu0 %1294
        %vm1296 = vcmask 777216
        %v1297 = vsel %vm1296, %v1283, %v1285
        %v1298 = vsel %vm1296, %v1285, %v1287
        %v1299 = vsel %vm1296, %v1287, %v1289
        %v1300 = vsel %vm1296, %v1289, %v1291
        %v1301 = vsel %vm1296, %v1291, %v1293
        %v1302 = vsel %vm1296, %v1293, %v1295
        %1310 = vst [vmem:[#allocation2 + $0x1f8] sm:$0xf] %v1297
        %1311 = vst [vmem:[#allocation2 + $0x200] sm:$0xf] %v1298
        %1312 = vst [vmem:[#allocation2 + $0x208] sm:$0xf] %v1299
        %1313 = vst [vmem:[#allocation2 + $0x210] sm:$0xf] %v1300
        %1314 = vst [vmem:[#allocation2 + $0x218] sm:$0xf] %v1301
        %1315 = vst [vmem:[#allocation2 + $0x220] sm:$0xf] %v1302
        %1316 = vst.msk [vmem:[#allocation2 + $0x228] sm:$0xf] %vm258, %v1295
        %v1317 = vld [vmem:[%s178 + $0x8] sm:$0xff]
        %v1318 = vld [vmem:[%s178 + $0x10] sm:$0xff]
        %v1319 = vld [vmem:[%s178 + $0x18] sm:$0xff]
        %v1320 = vld [vmem:[%s178 + $0x20] sm:$0xf]
        %v1325 = vunpack.c.l.b16 %v1317
        %v1326 = vunpack.c.h.b16 %v1317
        %v1327 = vunpack.c.l.b16 %v1318
        %v1328 = vunpack.c.h.b16 %v1318
        %v1329 = vunpack.c.l.b16 %v1319
        %v1330 = vunpack.c.h.b16 %v1319
        %v1331 = vunpack.c.l.b16 %v1320
        %v1332 = vpack.c.b16 %v1325, %v1325
        %v1333 = vpack.c.b16 %v1326, %v1326
        %v1334 = vpack.c.b16 %v1327, %v1327
        %v1335 = vpack.c.b16 %v1328, %v1328
        %v1336 = vpack.c.b16 %v1329, %v1329
        %v1337 = vpack.c.b16 %v1330, %v1330
        %v1338 = vpack.c.b16 %v1331, %v1331
        %1339 = vrot.lane.b32.xlu0 %v1332, 94
        %v1340 = vpop.permute.xlu0 %1339
        %1341 = vrot.lane.b32.xlu0 %v1333, 94
        %v1342 = vpop.permute.xlu0 %1341
        %1343 = vrot.lane.b32.xlu0 %v1334, 94
        %v1344 = vpop.permute.xlu0 %1343
        %1345 = vrot.lane.b32.xlu0 %v1335, 94
        %v1346 = vpop.permute.xlu0 %1345
        %1347 = vrot.lane.b32.xlu0 %v1336, 94
        %v1348 = vpop.permute.xlu0 %1347
        %1349 = vrot.lane.b32.xlu0 %v1337, 94
        %v1350 = vpop.permute.xlu0 %1349
        %1351 = vrot.lane.b32.xlu0 %v1338, 94
        %v1352 = vpop.permute.xlu0 %1351
        %vm1353 = vcmask 769024
        %v1354 = vsel %vm1353, %v1340, %v1342
        %v1355 = vsel %vm1353, %v1342, %v1344
        %v1356 = vsel %vm1353, %v1344, %v1346
        %v1357 = vsel %vm1353, %v1346, %v1348
        %v1358 = vsel %vm1353, %v1348, %v1350
        %v1359 = vsel %vm1353, %v1350, %v1352
        %1367 = vst [vmem:[#allocation2 + $0x1f8] sm:$0xf0] %v1354
        %1368 = vst [vmem:[#allocation2 + $0x200] sm:$0xf0] %v1355
        %1369 = vst [vmem:[#allocation2 + $0x208] sm:$0xf0] %v1356
        %1370 = vst [vmem:[#allocation2 + $0x210] sm:$0xf0] %v1357
        %1371 = vst [vmem:[#allocation2 + $0x218] sm:$0xf0] %v1358
        %1372 = vst [vmem:[#allocation2 + $0x220] sm:$0xf0] %v1359
        %1373 = vst.msk [vmem:[#allocation2 + $0x228] sm:$0xf0] %vm316, %v1352
        %v1374 = vld [vmem:[%s178 + $0x8] sm:$0xff]
        %v1375 = vld [vmem:[%s178 + $0x10] sm:$0xff]
        %v1376 = vld [vmem:[%s178 + $0x18] sm:$0xff]
        %v1377 = vld [vmem:[%s178 + $0x20] sm:$0xf]
        %v1382 = vunpack.c.l.b16 %v1374
        %v1383 = vunpack.c.h.b16 %v1374
        %v1384 = vunpack.c.l.b16 %v1375
        %v1385 = vunpack.c.h.b16 %v1375
        %v1386 = vunpack.c.l.b16 %v1376
        %v1387 = vunpack.c.h.b16 %v1376
        %v1388 = vunpack.c.l.b16 %v1377
        %v1389 = vpack.c.b16 %v1382, %v1382
        %v1390 = vpack.c.b16 %v1383, %v1383
        %v1391 = vpack.c.b16 %v1384, %v1384
        %v1392 = vpack.c.b16 %v1385, %v1385
        %v1393 = vpack.c.b16 %v1386, %v1386
        %v1394 = vpack.c.b16 %v1387, %v1387
        %v1395 = vpack.c.b16 %v1388, %v1388
        %1396 = vrot.lane.b32.xlu0 %v1389, 93
        %v1397 = vpop.permute.xlu0 %1396
        %1398 = vrot.lane.b32.xlu0 %v1390, 93
        %v1399 = vpop.permute.xlu0 %1398
        %1400 = vrot.lane.b32.xlu0 %v1391, 93
        %v1401 = vpop.permute.xlu0 %1400
        %1402 = vrot.lane.b32.xlu0 %v1392, 93
        %v1403 = vpop.permute.xlu0 %1402
        %1404 = vrot.lane.b32.xlu0 %v1393, 93
        %v1405 = vpop.permute.xlu0 %1404
        %1406 = vrot.lane.b32.xlu0 %v1394, 93
        %v1407 = vpop.permute.xlu0 %1406
        %1408 = vrot.lane.b32.xlu0 %v1395, 93
        %v1409 = vpop.permute.xlu0 %1408
        %vm1410 = vcmask 760832
        %v1411 = vsel %vm1410, %v1397, %v1399
        %v1412 = vsel %vm1410, %v1399, %v1401
        %v1413 = vsel %vm1410, %v1401, %v1403
        %v1414 = vsel %vm1410, %v1403, %v1405
        %v1415 = vsel %vm1410, %v1405, %v1407
        %v1416 = vsel %vm1410, %v1407, %v1409
        %1424 = vst [vmem:[#allocation2 + $0x230] sm:$0xf] %v1411
        %1425 = vst [vmem:[#allocation2 + $0x238] sm:$0xf] %v1412
        %1426 = vst [vmem:[#allocation2 + $0x240] sm:$0xf] %v1413
        %1427 = vst [vmem:[#allocation2 + $0x248] sm:$0xf] %v1414
        %1428 = vst [vmem:[#allocation2 + $0x250] sm:$0xf] %v1415
        %1429 = vst [vmem:[#allocation2 + $0x258] sm:$0xf] %v1416
        %1430 = vst.msk [vmem:[#allocation2 + $0x260] sm:$0xf] %vm258, %v1409
        %v1431 = vld [vmem:[%s178 + $0x8] sm:$0xff]
        %v1432 = vld [vmem:[%s178 + $0x10] sm:$0xff]
        %v1433 = vld [vmem:[%s178 + $0x18] sm:$0xff]
        %v1434 = vld [vmem:[%s178 + $0x20] sm:$0xf]
        %v1439 = vunpack.c.l.b16 %v1431
        %v1440 = vunpack.c.h.b16 %v1431
        %v1441 = vunpack.c.l.b16 %v1432
        %v1442 = vunpack.c.h.b16 %v1432
        %v1443 = vunpack.c.l.b16 %v1433
        %v1444 = vunpack.c.h.b16 %v1433
        %v1445 = vunpack.c.l.b16 %v1434
        %v1446 = vpack.c.b16 %v1439, %v1439
        %v1447 = vpack.c.b16 %v1440, %v1440
        %v1448 = vpack.c.b16 %v1441, %v1441
        %v1449 = vpack.c.b16 %v1442, %v1442
        %v1450 = vpack.c.b16 %v1443, %v1443
        %v1451 = vpack.c.b16 %v1444, %v1444
        %v1452 = vpack.c.b16 %v1445, %v1445
        %1453 = vrot.lane.b32.xlu0 %v1446, 85
        %v1454 = vpop.permute.xlu0 %1453
        %1455 = vrot.lane.b32.xlu0 %v1447, 85
        %v1456 = vpop.permute.xlu0 %1455
        %1457 = vrot.lane.b32.xlu0 %v1448, 85
        %v1458 = vpop.permute.xlu0 %1457
        %1459 = vrot.lane.b32.xlu0 %v1449, 85
        %v1460 = vpop.permute.xlu0 %1459
        %1461 = vrot.lane.b32.xlu0 %v1450, 85
        %v1462 = vpop.permute.xlu0 %1461
        %1463 = vrot.lane.b32.xlu0 %v1451, 85
        %v1464 = vpop.permute.xlu0 %1463
        %1465 = vrot.lane.b32.xlu0 %v1452, 85
        %v1466 = vpop.permute.xlu0 %1465
        %vm1467 = vcmask 695296
        %v1468 = vsel %vm1467, %v1454, %v1456
        %v1469 = vsel %vm1467, %v1456, %v1458
        %v1470 = vsel %vm1467, %v1458, %v1460
        %v1471 = vsel %vm1467, %v1460, %v1462
        %v1472 = vsel %vm1467, %v1462, %v1464
        %v1473 = vsel %vm1467, %v1464, %v1466
        %1481 = vst [vmem:[#allocation2 + $0x230] sm:$0xf0] %v1468
        %1482 = vst [vmem:[#allocation2 + $0x238] sm:$0xf0] %v1469
        %1483 = vst [vmem:[#allocation2 + $0x240] sm:$0xf0] %v1470
        %1484 = vst [vmem:[#allocation2 + $0x248] sm:$0xf0] %v1471
        %1485 = vst [vmem:[#allocation2 + $0x250] sm:$0xf0] %v1472
        %1486 = vst [vmem:[#allocation2 + $0x258] sm:$0xf0] %v1473
        %1487 = vst.msk [vmem:[#allocation2 + $0x260] sm:$0xf0] %vm316, %v1466
        %v1488 = vld [vmem:[%s178 + $0x8] sm:$0xff]
        %v1489 = vld [vmem:[%s178 + $0x10] sm:$0xff]
        %v1490 = vld [vmem:[%s178 + $0x18] sm:$0xff]
        %v1491 = vld [vmem:[%s178 + $0x20] sm:$0xf]
        %v1496 = vunpack.c.l.b16 %v1488
        %v1497 = vunpack.c.h.b16 %v1488
        %v1498 = vunpack.c.l.b16 %v1489
        %v1499 = vunpack.c.h.b16 %v1489
        %v1500 = vunpack.c.l.b16 %v1490
        %v1501 = vunpack.c.h.b16 %v1490
        %v1502 = vunpack.c.l.b16 %v1491
        %v1503 = vpack.c.b16 %v1496, %v1496
        %v1504 = vpack.c.b16 %v1497, %v1497
        %v1505 = vpack.c.b16 %v1498, %v1498
        %v1506 = vpack.c.b16 %v1499, %v1499
        %v1507 = vpack.c.b16 %v1500, %v1500
        %v1508 = vpack.c.b16 %v1501, %v1501
        %v1509 = vpack.c.b16 %v1502, %v1502
        %1510 = vrot.lane.b32.xlu0 %v1503, 84
        %v1511 = vpop.permute.xlu0 %1510
        %1512 = vrot.lane.b32.xlu0 %v1504, 84
        %v1513 = vpop.permute.xlu0 %1512
        %1514 = vrot.lane.b32.xlu0 %v1505, 84
        %v1515 = vpop.permute.xlu0 %1514
        %1516 = vrot.lane.b32.xlu0 %v1506, 84
        %v1517 = vpop.permute.xlu0 %1516
        %1518 = vrot.lane.b32.xlu0 %v1507, 84
        %v1519 = vpop.permute.xlu0 %1518
        %1520 = vrot.lane.b32.xlu0 %v1508, 84
        %v1521 = vpop.permute.xlu0 %1520
        %1522 = vrot.lane.b32.xlu0 %v1509, 84
        %v1523 = vpop.permute.xlu0 %1522
        %vm1524 = vcmask 687104
        %v1525 = vsel %vm1524, %v1511, %v1513
        %v1526 = vsel %vm1524, %v1513, %v1515
        %v1527 = vsel %vm1524, %v1515, %v1517
        %v1528 = vsel %vm1524, %v1517, %v1519
        %v1529 = vsel %vm1524, %v1519, %v1521
        %v1530 = vsel %vm1524, %v1521, %v1523
        %1538 = vst [vmem:[#allocation2 + $0x268] sm:$0xf] %v1525
        %1539 = vst [vmem:[#allocation2 + $0x270] sm:$0xf] %v1526
        %1540 = vst [vmem:[#allocation2 + $0x278] sm:$0xf] %v1527
        %1541 = vst [vmem:[#allocation2 + $0x280] sm:$0xf] %v1528
        %1542 = vst [vmem:[#allocation2 + $0x288] sm:$0xf] %v1529
        %1543 = vst [vmem:[#allocation2 + $0x290] sm:$0xf] %v1530
        %1544 = vst.msk [vmem:[#allocation2 + $0x298] sm:$0xf] %vm258, %v1523
        %v1545 = vld [vmem:[%s178 + $0x8] sm:$0xff]
        %v1546 = vld [vmem:[%s178 + $0x10] sm:$0xff]
        %v1547 = vld [vmem:[%s178 + $0x18] sm:$0xff]
        %v1548 = vld [vmem:[%s178 + $0x20] sm:$0xf]
        %v1553 = vunpack.c.l.b16 %v1545
        %v1554 = vunpack.c.h.b16 %v1545
        %v1555 = vunpack.c.l.b16 %v1546
        %v1556 = vunpack.c.h.b16 %v1546
        %v1557 = vunpack.c.l.b16 %v1547
        %v1558 = vunpack.c.h.b16 %v1547
        %v1559 = vunpack.c.l.b16 %v1548
        %v1560 = vpack.c.b16 %v1553, %v1553
        %v1561 = vpack.c.b16 %v1554, %v1554
        %v1562 = vpack.c.b16 %v1555, %v1555
        %v1563 = vpack.c.b16 %v1556, %v1556
        %v1564 = vpack.c.b16 %v1557, %v1557
        %v1565 = vpack.c.b16 %v1558, %v1558
        %v1566 = vpack.c.b16 %v1559, %v1559
        %1567 = vrot.lane.b32.xlu0 %v1560, 83
        %v1568 = vpop.permute.xlu0 %1567
        %1569 = vrot.lane.b32.xlu0 %v1561, 83
        %v1570 = vpop.permute.xlu0 %1569
        %1571 = vrot.lane.b32.xlu0 %v1562, 83
        %v1572 = vpop.permute.xlu0 %1571
        %1573 = vrot.lane.b32.xlu0 %v1563, 83
        %v1574 = vpop.permute.xlu0 %1573
        %1575 = vrot.lane.b32.xlu0 %v1564, 83
        %v1576 = vpop.permute.xlu0 %1575
        %1577 = vrot.lane.b32.xlu0 %v1565, 83
        %v1578 = vpop.permute.xlu0 %1577
        %1579 = vrot.lane.b32.xlu0 %v1566, 83
        %v1580 = vpop.permute.xlu0 %1579
        %vm1581 = vcmask 678912
        %v1582 = vsel %vm1581, %v1568, %v1570
        %v1583 = vsel %vm1581, %v1570, %v1572
        %v1584 = vsel %vm1581, %v1572, %v1574
        %v1585 = vsel %vm1581, %v1574, %v1576
        %v1586 = vsel %vm1581, %v1576, %v1578
        %v1587 = vsel %vm1581, %v1578, %v1580
        %1595 = vst [vmem:[#allocation2 + $0x268] sm:$0xf0] %v1582
        %1596 = vst [vmem:[#allocation2 + $0x270] sm:$0xf0] %v1583
        %1597 = vst [vmem:[#allocation2 + $0x278] sm:$0xf0] %v1584
        %1598 = vst [vmem:[#allocation2 + $0x280] sm:$0xf0] %v1585
        %1599 = vst [vmem:[#allocation2 + $0x288] sm:$0xf0] %v1586
        %1600 = vst [vmem:[#allocation2 + $0x290] sm:$0xf0] %v1587
        %1601 = vst.msk [vmem:[#allocation2 + $0x298] sm:$0xf0] %vm316, %v1580
        %v1602 = vld [vmem:[%s178 + $0x8] sm:$0xff]
        %v1603 = vld [vmem:[%s178 + $0x10] sm:$0xff]
        %v1604 = vld [vmem:[%s178 + $0x18] sm:$0xff]
        %v1605 = vld [vmem:[%s178 + $0x20] sm:$0xf]
        %v1610 = vunpack.c.l.b16 %v1602
        %v1611 = vunpack.c.h.b16 %v1602
        %v1612 = vunpack.c.l.b16 %v1603
        %v1613 = vunpack.c.h.b16 %v1603
        %v1614 = vunpack.c.l.b16 %v1604
        %v1615 = vunpack.c.h.b16 %v1604
        %v1616 = vunpack.c.l.b16 %v1605
        %v1617 = vpack.c.b16 %v1610, %v1610
        %v1618 = vpack.c.b16 %v1611, %v1611
        %v1619 = vpack.c.b16 %v1612, %v1612
        %v1620 = vpack.c.b16 %v1613, %v1613
        %v1621 = vpack.c.b16 %v1614, %v1614
        %v1622 = vpack.c.b16 %v1615, %v1615
        %v1623 = vpack.c.b16 %v1616, %v1616
        %1624 = vrot.lane.b32.xlu0 %v1617, 75
        %v1625 = vpop.permute.xlu0 %1624
        %1626 = vrot.lane.b32.xlu0 %v1618, 75
        %v1627 = vpop.permute.xlu0 %1626
        %1628 = vrot.lane.b32.xlu0 %v1619, 75
        %v1629 = vpop.permute.xlu0 %1628
        %1630 = vrot.lane.b32.xlu0 %v1620, 75
        %v1631 = vpop.permute.xlu0 %1630
        %1632 = vrot.lane.b32.xlu0 %v1621, 75
        %v1633 = vpop.permute.xlu0 %1632
        %1634 = vrot.lane.b32.xlu0 %v1622, 75
        %v1635 = vpop.permute.xlu0 %1634
        %1636 = vrot.lane.b32.xlu0 %v1623, 75
        %v1637 = vpop.permute.xlu0 %1636
        %vm1638 = vcmask 613376
        %v1639 = vsel %vm1638, %v1625, %v1627
        %v1640 = vsel %vm1638, %v1627, %v1629
        %v1641 = vsel %vm1638, %v1629, %v1631
        %v1642 = vsel %vm1638, %v1631, %v1633
        %v1643 = vsel %vm1638, %v1633, %v1635
        %v1644 = vsel %vm1638, %v1635, %v1637
        %1652 = vst [vmem:[#allocation2 + $0x2a0] sm:$0xf] %v1639
        %1653 = vst [vmem:[#allocation2 + $0x2a8] sm:$0xf] %v1640
        %1654 = vst [vmem:[#allocation2 + $0x2b0] sm:$0xf] %v1641
        %1655 = vst [vmem:[#allocation2 + $0x2b8] sm:$0xf] %v1642
        %1656 = vst [vmem:[#allocation2 + $0x2c0] sm:$0xf] %v1643
        %1657 = vst [vmem:[#allocation2 + $0x2c8] sm:$0xf] %v1644
        %1658 = vst.msk [vmem:[#allocation2 + $0x2d0] sm:$0xf] %vm258, %v1637
        %v1659 = vld [vmem:[%s178 + $0x8] sm:$0xff]
        %v1660 = vld [vmem:[%s178 + $0x10] sm:$0xff]
        %v1661 = vld [vmem:[%s178 + $0x18] sm:$0xff]
        %v1662 = vld [vmem:[%s178 + $0x20] sm:$0xf]
        %v1667 = vunpack.c.l.b16 %v1659
        %v1668 = vunpack.c.h.b16 %v1659
        %v1669 = vunpack.c.l.b16 %v1660
        %v1670 = vunpack.c.h.b16 %v1660
        %v1671 = vunpack.c.l.b16 %v1661
        %v1672 = vunpack.c.h.b16 %v1661
        %v1673 = vunpack.c.l.b16 %v1662
        %v1674 = vpack.c.b16 %v1667, %v1667
        %v1675 = vpack.c.b16 %v1668, %v1668
        %v1676 = vpack.c.b16 %v1669, %v1669
        %v1677 = vpack.c.b16 %v1670, %v1670
        %v1678 = vpack.c.b16 %v1671, %v1671
        %v1679 = vpack.c.b16 %v1672, %v1672
        %v1680 = vpack.c.b16 %v1673, %v1673
        %1681 = vrot.lane.b32.xlu0 %v1674, 74
        %v1682 = vpop.permute.xlu0 %1681
        %1683 = vrot.lane.b32.xlu0 %v1675, 74
        %v1684 = vpop.permute.xlu0 %1683
        %1685 = vrot.lane.b32.xlu0 %v1676, 74
        %v1686 = vpop.permute.xlu0 %1685
        %1687 = vrot.lane.b32.xlu0 %v1677, 74
        %v1688 = vpop.permute.xlu0 %1687
        %1689 = vrot.lane.b32.xlu0 %v1678, 74
        %v1690 = vpop.permute.xlu0 %1689
        %1691 = vrot.lane.b32.xlu0 %v1679, 74
        %v1692 = vpop.permute.xlu0 %1691
        %1693 = vrot.lane.b32.xlu0 %v1680, 74
        %v1694 = vpop.permute.xlu0 %1693
        %vm1695 = vcmask 605184
        %v1696 = vsel %vm1695, %v1682, %v1684
        %v1697 = vsel %vm1695, %v1684, %v1686
        %v1698 = vsel %vm1695, %v1686, %v1688
        %v1699 = vsel %vm1695, %v1688, %v1690
        %v1700 = vsel %vm1695, %v1690, %v1692
        %v1701 = vsel %vm1695, %v1692, %v1694
        %1709 = vst [vmem:[#allocation2 + $0x2a0] sm:$0xf0] %v1696
        %1710 = vst [vmem:[#allocation2 + $0x2a8] sm:$0xf0] %v1697
        %1711 = vst [vmem:[#allocation2 + $0x2b0] sm:$0xf0] %v1698
        %1712 = vst [vmem:[#allocation2 + $0x2b8] sm:$0xf0] %v1699
        %1713 = vst [vmem:[#allocation2 + $0x2c0] sm:$0xf0] %v1700
        %1714 = vst [vmem:[#allocation2 + $0x2c8] sm:$0xf0] %v1701
        %1715 = vst.msk [vmem:[#allocation2 + $0x2d0] sm:$0xf0] %vm316, %v1694
        %v1716 = vld [vmem:[%s178 + $0x8] sm:$0xff]
        %v1717 = vld [vmem:[%s178 + $0x10] sm:$0xff]
        %v1718 = vld [vmem:[%s178 + $0x18] sm:$0xff]
        %v1719 = vld [vmem:[%s178 + $0x20] sm:$0xf]
        %v1724 = vunpack.c.l.b16 %v1716
        %v1725 = vunpack.c.h.b16 %v1716
        %v1726 = vunpack.c.l.b16 %v1717
        %v1727 = vunpack.c.h.b16 %v1717
        %v1728 = vunpack.c.l.b16 %v1718
        %v1729 = vunpack.c.h.b16 %v1718
        %v1730 = vunpack.c.l.b16 %v1719
        %v1731 = vpack.c.b16 %v1724, %v1724
        %v1732 = vpack.c.b16 %v1725, %v1725
        %v1733 = vpack.c.b16 %v1726, %v1726
        %v1734 = vpack.c.b16 %v1727, %v1727
        %v1735 = vpack.c.b16 %v1728, %v1728
        %v1736 = vpack.c.b16 %v1729, %v1729
        %v1737 = vpack.c.b16 %v1730, %v1730
        %1738 = vrot.lane.b32.xlu0 %v1731, 73
        %v1739 = vpop.permute.xlu0 %1738
        %1740 = vrot.lane.b32.xlu0 %v1732, 73
        %v1741 = vpop.permute.xlu0 %1740
        %1742 = vrot.lane.b32.xlu0 %v1733, 73
        %v1743 = vpop.permute.xlu0 %1742
        %1744 = vrot.lane.b32.xlu0 %v1734, 73
        %v1745 = vpop.permute.xlu0 %1744
        %1746 = vrot.lane.b32.xlu0 %v1735, 73
        %v1747 = vpop.permute.xlu0 %1746
        %1748 = vrot.lane.b32.xlu0 %v1736, 73
        %v1749 = vpop.permute.xlu0 %1748
        %1750 = vrot.lane.b32.xlu0 %v1737, 73
        %v1751 = vpop.permute.xlu0 %1750
        %vm1752 = vcmask 596992
        %v1753 = vsel %vm1752, %v1739, %v1741
        %v1754 = vsel %vm1752, %v1741, %v1743
        %v1755 = vsel %vm1752, %v1743, %v1745
        %v1756 = vsel %vm1752, %v1745, %v1747
        %v1757 = vsel %vm1752, %v1747, %v1749
        %v1758 = vsel %vm1752, %v1749, %v1751
        %1766 = vst [vmem:[#allocation2 + $0x2d8] sm:$0xf] %v1753
        %1767 = vst [vmem:[#allocation2 + $0x2e0] sm:$0xf] %v1754
        %1768 = vst [vmem:[#allocation2 + $0x2e8] sm:$0xf] %v1755
        %1769 = vst [vmem:[#allocation2 + $0x2f0] sm:$0xf] %v1756
        %1770 = vst [vmem:[#allocation2 + $0x2f8] sm:$0xf] %v1757
        %1771 = vst [vmem:[#allocation2 + $0x300] sm:$0xf] %v1758
        %1772 = vst.msk [vmem:[#allocation2 + $0x308] sm:$0xf] %vm258, %v1751
        %1773 = vst [vmem:[#allocation2 + $0x2d8] sm:$0xf0] 0
        %1774 = vst [vmem:[#allocation2 + $0x2e0] sm:$0xf0] 0
        %1775 = vst [vmem:[#allocation2 + $0x2e8] sm:$0xf0] 0
        %1776 = vst [vmem:[#allocation2 + $0x2f0] sm:$0xf0] 0
        %1777 = vst [vmem:[#allocation2 + $0x2f8] sm:$0xf0] 0
        %1778 = vst [vmem:[#allocation2 + $0x300] sm:$0xf0] 0
        %1779 = vst.msk [vmem:[#allocation2 + $0x308] sm:$0xf0] %vm316, 0
        %1780 = vst [vmem:[#allocation2 + $0x310] sm:$0xff] 0
        %1781 = vst [vmem:[#allocation2 + $0x318] sm:$0xff] 0
        %1782 = vst [vmem:[#allocation2 + $0x320] sm:$0xff] 0
        %1783 = vst [vmem:[#allocation2 + $0x328] sm:$0xff] 0
        %1784 = vst [vmem:[#allocation2 + $0x330] sm:$0xff] 0
        %1785 = vst [vmem:[#allocation2 + $0x338] sm:$0xff] 0
        %vm1786 = vcmask 261120
        %1787 = vst.msk [vmem:[#allocation2 + $0x340] sm:$0xff] %vm1786, 0
        %1788 = vst [vmem:[#allocation2 + $0x348] sm:$0xff] 0
        %1789 = vst [vmem:[#allocation2 + $0x350] sm:$0xff] 0
        %1790 = vst [vmem:[#allocation2 + $0x358] sm:$0xff] 0
        %1791 = vst [vmem:[#allocation2 + $0x360] sm:$0xff] 0
        %1792 = vst [vmem:[#allocation2 + $0x368] sm:$0xff] 0
        %1793 = vst [vmem:[#allocation2 + $0x370] sm:$0xff] 0
        %1794 = vst.msk [vmem:[#allocation2 + $0x378] sm:$0xff] %vm1786, 0
        %v1795 = vld [vmem:[%s1] sm:$0xff]
        %v1796 = vld [vmem:[%s1 + $0x8] sm:$0xff]
        %v1797 = vld [vmem:[%s1 + $0x10] sm:$0xff]
        %v1798 = vld [vmem:[%s1 + $0x18] sm:$0xff]
        %v1799 = vld [vmem:[#allocation2] sm:$0xff]
        %v1800 = vld [vmem:[#allocation2 + $0x8] sm:$0xff]
        %v1801 = vld [vmem:[#allocation2 + $0x10] sm:$0xff]
        %v1802 = vld [vmem:[#allocation2 + $0x18] sm:$0xff]
        %v1803 = vld [vmem:[#allocation2 + $0x20] sm:$0xff]
        %v1804 = vld [vmem:[#allocation2 + $0x28] sm:$0xff]
        %v1805 = vld [vmem:[#allocation2 + $0x30] sm:$0xff]
        %v1806 = vld [vmem:[#allocation2 + $0x38] sm:$0xff]
        %v1807 = vld [vmem:[#allocation2 + $0x40] sm:$0xff]
        %v1808 = vld [vmem:[#allocation2 + $0x48] sm:$0xff]
        %v1809 = vld [vmem:[#allocation2 + $0x50] sm:$0xff]
        %v1810 = vld [vmem:[#allocation2 + $0x58] sm:$0xff]
        %v1811 = vld [vmem:[#allocation2 + $0x60] sm:$0xff]
        %v1812 = vld [vmem:[#allocation2 + $0x68] sm:$0xff]
        %v1813 = vld [vmem:[#allocation2 + $0x70] sm:$0xff]
        %v1814 = vld [vmem:[#allocation2 + $0x78] sm:$0xff]
        %v1815 = vld [vmem:[#allocation2 + $0x80] sm:$0xff]
        %v1816 = vld [vmem:[#allocation2 + $0x88] sm:$0xff]
        %v1817 = vld [vmem:[#allocation2 + $0x90] sm:$0xff]
        %v1818 = vld [vmem:[#allocation2 + $0x98] sm:$0xff]
        %v1819 = vld [vmem:[#allocation2 + $0xa0] sm:$0xff]
        %v1820 = vld [vmem:[#allocation2 + $0xa8] sm:$0xff]
        %v1821 = vld [vmem:[#allocation2 + $0xb0] sm:$0xff]
        %v1822 = vld [vmem:[#allocation2 + $0xb8] sm:$0xff]
        %v1823 = vld [vmem:[#allocation2 + $0xc0] sm:$0xff]
        %v1824 = vld [vmem:[#allocation2 + $0xc8] sm:$0xff]
        %v1825 = vld [vmem:[#allocation2 + $0xd0] sm:$0xff]
        %v1826 = vld [vmem:[#allocation2 + $0xd8] sm:$0xff]
        %v1827 = vld [vmem:[#allocation2 + $0xe0] sm:$0xff]
        %v1828 = vld [vmem:[#allocation2 + $0xe8] sm:$0xff]
        %v1829 = vld [vmem:[#allocation2 + $0xf0] sm:$0xff]
        %v1830 = vld [vmem:[#allocation2 + $0xf8] sm:$0xff]
        %v1831 = vld [vmem:[#allocation2 + $0x100] sm:$0xff]
        %v1832 = vld [vmem:[#allocation2 + $0x108] sm:$0xff]
        %v1833 = vld [vmem:[#allocation2 + $0x110] sm:$0xff]
        %v1834 = vld [vmem:[#allocation2 + $0x118] sm:$0xff]
        %v1835 = vld [vmem:[#allocation2 + $0x120] sm:$0xff]
        %v1836 = vld [vmem:[#allocation2 + $0x128] sm:$0xff]
        %v1837 = vld [vmem:[#allocation2 + $0x130] sm:$0xff]
        %v1838 = vld [vmem:[#allocation2 + $0x138] sm:$0xff]
        %v1839 = vld [vmem:[#allocation2 + $0x140] sm:$0xff]
        %v1840 = vld [vmem:[#allocation2 + $0x148] sm:$0xff]
        %v1841 = vld [vmem:[#allocation2 + $0x150] sm:$0xff]
        %v1842 = vld [vmem:[#allocation2 + $0x158] sm:$0xff]
        %v1843 = vld [vmem:[#allocation2 + $0x160] sm:$0xff]
        %v1844 = vld [vmem:[#allocation2 + $0x168] sm:$0xff]
        %v1845 = vld [vmem:[#allocation2 + $0x170] sm:$0xff]
        %v1846 = vld [vmem:[#allocation2 + $0x178] sm:$0xff]
        %v1847 = vld [vmem:[#allocation2 + $0x180] sm:$0xff]
        %v1848 = vld [vmem:[#allocation2 + $0x188] sm:$0xff]
        %v1849 = vld [vmem:[#allocation2 + $0x190] sm:$0xff]
        %v1850 = vld [vmem:[#allocation2 + $0x198] sm:$0xff]
        %v1851 = vld [vmem:[#allocation2 + $0x1a0] sm:$0xff]
        %v1852 = vld [vmem:[#allocation2 + $0x1a8] sm:$0xff]
        %v1853 = vld [vmem:[#allocation2 + $0x1b0] sm:$0xff]
        %v1854 = vld [vmem:[#allocation2 + $0x1b8] sm:$0xff]
        %v1855 = vld [vmem:[#allocation2 + $0x1c0] sm:$0xff]
        %v1856 = vld [vmem:[#allocation2 + $0x1c8] sm:$0xff]
        %v1857 = vld [vmem:[#allocation2 + $0x1d0] sm:$0xff]
        %v1858 = vld [vmem:[#allocation2 + $0x1d8] sm:$0xff]
        %v1859 = vld [vmem:[#allocation2 + $0x1e0] sm:$0xff]
        %v1860 = vld [vmem:[#allocation2 + $0x1e8] sm:$0xff]
        %v1861 = vld [vmem:[#allocation2 + $0x1f0] sm:$0xff]
        %v1862 = vld [vmem:[#allocation2 + $0x1f8] sm:$0xff]
        %v1863 = vld [vmem:[#allocation2 + $0x200] sm:$0xff]
        %v1864 = vld [vmem:[#allocation2 + $0x208] sm:$0xff]
        %v1865 = vld [vmem:[#allocation2 + $0x210] sm:$0xff]
        %v1866 = vld [vmem:[#allocation2 + $0x218] sm:$0xff]
        %v1867 = vld [vmem:[#allocation2 + $0x220] sm:$0xff]
        %v1868 = vld [vmem:[#allocation2 + $0x228] sm:$0xff]
        %v1869 = vld [vmem:[#allocation2 + $0x230] sm:$0xff]
        %v1870 = vld [vmem:[#allocation2 + $0x238] sm:$0xff]
        %v1871 = vld [vmem:[#allocation2 + $0x240] sm:$0xff]
        %v1872 = vld [vmem:[#allocation2 + $0x248] sm:$0xff]
        %v1873 = vld [vmem:[#allocation2 + $0x250] sm:$0xff]
        %v1874 = vld [vmem:[#allocation2 + $0x258] sm:$0xff]
        %v1875 = vld [vmem:[#allocation2 + $0x260] sm:$0xff]
        %v1876 = vld [vmem:[#allocation2 + $0x268] sm:$0xff]
        %v1877 = vld [vmem:[#allocation2 + $0x270] sm:$0xff]
        %v1878 = vld [vmem:[#allocation2 + $0x278] sm:$0xff]
        %v1879 = vld [vmem:[#allocation2 + $0x280] sm:$0xff]
        %v1880 = vld [vmem:[#allocation2 + $0x288] sm:$0xff]
        %v1881 = vld [vmem:[#allocation2 + $0x290] sm:$0xff]
        %v1882 = vld [vmem:[#allocation2 + $0x298] sm:$0xff]
        %v1883 = vld [vmem:[#allocation2 + $0x2a0] sm:$0xff]
        %v1884 = vld [vmem:[#allocation2 + $0x2a8] sm:$0xff]
        %v1885 = vld [vmem:[#allocation2 + $0x2b0] sm:$0xff]
        %v1886 = vld [vmem:[#allocation2 + $0x2b8] sm:$0xff]
        %v1887 = vld [vmem:[#allocation2 + $0x2c0] sm:$0xff]
        %v1888 = vld [vmem:[#allocation2 + $0x2c8] sm:$0xff]
        %v1889 = vld [vmem:[#allocation2 + $0x2d0] sm:$0xff]
        %v1890 = vld [vmem:[#allocation2 + $0x2d8] sm:$0xff]
        %v1891 = vld [vmem:[#allocation2 + $0x2e0] sm:$0xff]
        %v1892 = vld [vmem:[#allocation2 + $0x2e8] sm:$0xff]
        %v1893 = vld [vmem:[#allocation2 + $0x2f0] sm:$0xff]
        %v1894 = vld [vmem:[#allocation2 + $0x2f8] sm:$0xff]
        %v1895 = vld [vmem:[#allocation2 + $0x300] sm:$0xff]
        %v1896 = vld [vmem:[#allocation2 + $0x308] sm:$0xff]
        %v1897 = vld [vmem:[#allocation2 + $0x310] sm:$0xff]
        %v1898 = vld [vmem:[#allocation2 + $0x318] sm:$0xff]
        %v1899 = vld [vmem:[#allocation2 + $0x320] sm:$0xff]
        %v1900 = vld [vmem:[#allocation2 + $0x328] sm:$0xff]
        %v1901 = vld [vmem:[#allocation2 + $0x330] sm:$0xff]
        %v1902 = vld [vmem:[#allocation2 + $0x338] sm:$0xff]
        %v1903 = vld [vmem:[#allocation2 + $0x340] sm:$0xff]
        %v1904 = vld [vmem:[#allocation2 + $0x348] sm:$0xff]
        %v1905 = vld [vmem:[#allocation2 + $0x350] sm:$0xff]
        %v1906 = vld [vmem:[#allocation2 + $0x358] sm:$0xff]
        %v1907 = vld [vmem:[#allocation2 + $0x360] sm:$0xff]
        %v1908 = vld [vmem:[#allocation2 + $0x368] sm:$0xff]
        %v1909 = vld [vmem:[#allocation2 + $0x370] sm:$0xff]
        %v1910 = vld [vmem:[#allocation2 + $0x378] sm:$0xff]
        %v1911 = vld [vmem:[%s2] sm:$0xff]
        %v1912 = vld [vmem:[%s2 + $0x8] sm:$0xff]
        %v1913 = vld [vmem:[%s2 + $0x10] sm:$0xff]
        %v1914 = vld [vmem:[%s2 + $0x18] sm:$0xff]
        %1916 = vset.pattern.permute.xlu0 0
        %1917 = vperm.xlu0 %1916, %v1911
        %v1918 = vpop.permute.xlu0 %1917
        %1921 = vset.pattern.permute.xlu0 0
        %1922 = vperm.xlu0 %1921, %v1912
        %v1923 = vpop.permute.xlu0 %1922
        %1926 = vset.pattern.permute.xlu0 0
        %1927 = vperm.xlu0 %1926, %v1913
        %v1928 = vpop.permute.xlu0 %1927
        %1931 = vset.pattern.permute.xlu0 0
        %1932 = vperm.xlu0 %1931, %v1914
        %v1933 = vpop.permute.xlu0 %1932
        %v1939 = vunpack.c.l.b16 %v1795
        %v1940 = vunpack.c.h.b16 %v1795
        %v1941 = vunpack.c.l.b16 %v1796
        %v1942 = vunpack.c.h.b16 %v1796
        %v1943 = vunpack.c.l.b16 %v1797
        %v1944 = vunpack.c.h.b16 %v1797
        %v1945 = vunpack.c.l.b16 %v1798
        %v1946 = vunpack.c.h.b16 %v1798
        %v1947 = vpack.c.b16 %v1941, %v1939
        %v1948 = vpack.c.b16 %v1942, %v1940
        %v1949 = vpack.c.b16 %v1945, %v1943
        %v1950 = vpack.c.b16 %v1946, %v1944
        %1955 = vmatprep.subr.bf16.mxu0 %v1800
        %1956 = vmatpush1.bf16.msra.mxu0 %v1799
        %1957 = vmatprep.subr.bf16.mxu0 %v1807
        %1958 = vmatpush1.bf16.msra.mxu0 %v1806
        %1959 = vmatprep.subr.bf16.mxu0 %v1814
        %1960 = vmatpush1.bf16.msra.mxu0 %v1813
        %1961 = vmatprep.subr.bf16.mxu0 %v1821
        %1962 = vmatpush1.bf16.msra.mxu0 %v1820
        %1963 = vmatprep.subr.bf16.mxu0 %v1828
        %1964 = vmatpush1.bf16.msra.mxu0 %v1827
        %1965 = vmatprep.subr.bf16.mxu0 %v1835
        %1966 = vmatpush1.bf16.msra.mxu0 %v1834
        %1967 = vmatprep.subr.bf16.mxu0 %v1842
        %1968 = vmatpush1.bf16.msra.mxu0 %v1841
        %1969 = vmatprep.subr.bf16.mxu0 %v1849
        %1970 = vmatpush1.bf16.msra.mxu0 %v1848
        %1971 = vmatprep.subr.bf16.mxu0 %v1856
        %1972 = vmatpush1.bf16.msra.mxu0 %v1855
        %1973 = vmatprep.subr.bf16.mxu0 %v1863
        %1974 = vmatpush1.bf16.msra.mxu0 %v1862
        %1975 = vmatprep.subr.bf16.mxu0 %v1870
        %1976 = vmatpush1.bf16.msra.mxu0 %v1869
        %1977 = vmatprep.subr.bf16.mxu0 %v1877
        %1978 = vmatpush1.bf16.msra.mxu0 %v1876
        %1979 = vmatprep.subr.bf16.mxu0 %v1884
        %1980 = vmatpush1.bf16.msra.mxu0 %v1883
        %1981 = vmatprep.subr.bf16.mxu0 %v1891
        %1982 = vmatpush1.bf16.msra.mxu0 %v1890
        %1983 = vmatprep.subr.bf16.mxu0 %v1898
        %1984 = vmatpush1.bf16.msra.mxu0 %v1897
        %1985 = vmatprep.subr.bf16.mxu0 %v1905
        %1986 = vmatpush1.bf16.msra.mxu0 %v1904
        %1987 = vmatprep.mubr.bf16.mxu0 %v1948
        %1988 = vmatmul.mubr.bf16.gmra.mrb[0].mxu0 %v1947
        %v1989 = vpop.f32.mrb[0].mxu0
        %v1990 = vadd.f32 %v1918, %v1989
        %v1991 = vpop.f32.mrb[0].mxu0
        %v1992 = vadd.f32 %v1918, %v1991
        %v1993 = vpop.f32.mrb[0].mxu0
        %v1994 = vadd.f32 %v1923, %v1993
        %v1995 = vpop.f32.mrb[0].mxu0
        %v1996 = vadd.f32 %v1923, %v1995
        %1997 = vmatprep.mubr.bf16.mxu0 %v1950
        %1998 = vmatmul.mubr.bf16.gmra.mrb[0].mxu0 %v1949
        %v1999 = vpop.f32.mrb[0].mxu0
        %v2000 = vadd.f32 %v1928, %v1999
        %v2001 = vpop.f32.mrb[0].mxu0
        %v2002 = vadd.f32 %v1928, %v2001
        %v2003 = vpop.f32.mrb[0].mxu0
        %v2004 = vadd.f32 %v1933, %v2003
        %v2005 = vpop.f32.mrb[0].mxu0
        %v2006 = vadd.f32 %v1933, %v2005
        %2007 = vdwg.mxu0
        %2008 = vmatprep.subr.bf16.mxu0 %v1802
        %2009 = vmatpush1.bf16.msra.mxu0 %v1801
        %2010 = vmatprep.subr.bf16.mxu0 %v1809
        %2011 = vmatpush1.bf16.msra.mxu0 %v1808
        %2012 = vmatprep.subr.bf16.mxu0 %v1816
        %2013 = vmatpush1.bf16.msra.mxu0 %v1815
        %2014 = vmatprep.subr.bf16.mxu0 %v1823
        %2015 = vmatpush1.bf16.msra.mxu0 %v1822
        %2016 = vmatprep.subr.bf16.mxu0 %v1830
        %2017 = vmatpush1.bf16.msra.mxu0 %v1829
        %2018 = vmatprep.subr.bf16.mxu0 %v1837
        %2019 = vmatpush1.bf16.msra.mxu0 %v1836
        %2020 = vmatprep.subr.bf16.mxu0 %v1844
        %2021 = vmatpush1.bf16.msra.mxu0 %v1843
        %2022 = vmatprep.subr.bf16.mxu0 %v1851
        %2023 = vmatpush1.bf16.msra.mxu0 %v1850
        %2024 = vmatprep.subr.bf16.mxu0 %v1858
        %2025 = vmatpush1.bf16.msra.mxu0 %v1857
        %2026 = vmatprep.subr.bf16.mxu0 %v1865
        %2027 = vmatpush1.bf16.msra.mxu0 %v1864
        %2028 = vmatprep.subr.bf16.mxu0 %v1872
        %2029 = vmatpush1.bf16.msra.mxu0 %v1871
        %2030 = vmatprep.subr.bf16.mxu0 %v1879
        %2031 = vmatpush1.bf16.msra.mxu0 %v1878
        %2032 = vmatprep.subr.bf16.mxu0 %v1886
        %2033 = vmatpush1.bf16.msra.mxu0 %v1885
        %2034 = vmatprep.subr.bf16.mxu0 %v1893
        %2035 = vmatpush1.bf16.msra.mxu0 %v1892
        %2036 = vmatprep.subr.bf16.mxu0 %v1900
        %2037 = vmatpush1.bf16.msra.mxu0 %v1899
        %2038 = vmatprep.subr.bf16.mxu0 %v1907
        %2039 = vmatpush1.bf16.msra.mxu0 %v1906
        %2040 = vmatprep.mubr.bf16.mxu0 %v1948
        %2041 = vmatmul.mubr.bf16.gmra.mrb[0].mxu0 %v1947
        %v2042 = vpop.f32.mrb[0].mxu0
        %v2043 = vadd.f32 %v1918, %v2042
        %v2044 = vpop.f32.mrb[0].mxu0
        %v2045 = vadd.f32 %v1918, %v2044
        %v2046 = vpop.f32.mrb[0].mxu0
        %v2047 = vadd.f32 %v1923, %v2046
        %v2048 = vpop.f32.mrb[0].mxu0
        %v2049 = vadd.f32 %v1923, %v2048
        %2050 = vmatprep.mubr.bf16.mxu0 %v1950
        %2051 = vmatmul.mubr.bf16.gmra.mrb[0].mxu0 %v1949
        %v2052 = vpop.f32.mrb[0].mxu0
        %v2053 = vadd.f32 %v1928, %v2052
        %v2054 = vpop.f32.mrb[0].mxu0
        %v2055 = vadd.f32 %v1928, %v2054
        %v2056 = vpop.f32.mrb[0].mxu0
        %v2057 = vadd.f32 %v1933, %v2056
        %v2058 = vpop.f32.mrb[0].mxu0
        %v2059 = vadd.f32 %v1933, %v2058
        %2060 = vdwg.mxu0
        %2061 = vmatprep.subr.bf16.mxu0 %v1804
        %2062 = vmatpush1.bf16.msra.mxu0 %v1803
        %2063 = vmatprep.subr.bf16.mxu0 %v1811
        %2064 = vmatpush1.bf16.msra.mxu0 %v1810
        %2065 = vmatprep.subr.bf16.mxu0 %v1818
        %2066 = vmatpush1.bf16.msra.mxu0 %v1817
        %2067 = vmatprep.subr.bf16.mxu0 %v1825
        %2068 = vmatpush1.bf16.msra.mxu0 %v1824
        %2069 = vmatprep.subr.bf16.mxu0 %v1832
        %2070 = vmatpush1.bf16.msra.mxu0 %v1831
        %2071 = vmatprep.subr.bf16.mxu0 %v1839
        %2072 = vmatpush1.bf16.msra.mxu0 %v1838
        %2073 = vmatprep.subr.bf16.mxu0 %v1846
        %2074 = vmatpush1.bf16.msra.mxu0 %v1845
        %2075 = vmatprep.subr.bf16.mxu0 %v1853
        %2076 = vmatpush1.bf16.msra.mxu0 %v1852
        %2077 = vmatprep.subr.bf16.mxu0 %v1860
        %2078 = vmatpush1.bf16.msra.mxu0 %v1859
        %2079 = vmatprep.subr.bf16.mxu0 %v1867
        %2080 = vmatpush1.bf16.msra.mxu0 %v1866
        %2081 = vmatprep.subr.bf16.mxu0 %v1874
        %2082 = vmatpush1.bf16.msra.mxu0 %v1873
        %2083 = vmatprep.subr.bf16.mxu0 %v1881
        %2084 = vmatpush1.bf16.msra.mxu0 %v1880
        %2085 = vmatprep.subr.bf16.mxu0 %v1888
        %2086 = vmatpush1.bf16.msra.mxu0 %v1887
        %2087 = vmatprep.subr.bf16.mxu0 %v1895
        %2088 = vmatpush1.bf16.msra.mxu0 %v1894
        %2089 = vmatprep.subr.bf16.mxu0 %v1902
        %2090 = vmatpush1.bf16.msra.mxu0 %v1901
        %2091 = vmatprep.subr.bf16.mxu0 %v1909
        %2092 = vmatpush1.bf16.msra.mxu0 %v1908
        %2093 = vmatprep.mubr.bf16.mxu0 %v1948
        %2094 = vmatmul.mubr.bf16.gmra.mrb[0].mxu0 %v1947
        %v2095 = vpop.f32.mrb[0].mxu0
        %v2096 = vadd.f32 %v1918, %v2095
        %v2097 = vpop.f32.mrb[0].mxu0
        %v2098 = vadd.f32 %v1918, %v2097
        %v2099 = vpop.f32.mrb[0].mxu0
        %v2100 = vadd.f32 %v1923, %v2099
        %v2101 = vpop.f32.mrb[0].mxu0
        %v2102 = vadd.f32 %v1923, %v2101
        %2103 = vmatprep.mubr.bf16.mxu0 %v1950
        %2104 = vmatmul.mubr.bf16.gmra.mrb[0].mxu0 %v1949
        %v2105 = vpop.f32.mrb[0].mxu0
        %v2106 = vadd.f32 %v1928, %v2105
        %v2107 = vpop.f32.mrb[0].mxu0
        %v2108 = vadd.f32 %v1928, %v2107
        %v2109 = vpop.f32.mrb[0].mxu0
        %v2110 = vadd.f32 %v1933, %v2109
        %v2111 = vpop.f32.mrb[0].mxu0
        %v2112 = vadd.f32 %v1933, %v2111
        %2113 = vdwg.mxu0
        %2114 = vmatprep.subr.bf16.mxu0 0
        %2115 = vmatpush1.bf16.msra.mxu0 %v1805
        %2116 = vmatprep.subr.bf16.mxu0 0
        %2117 = vmatpush1.bf16.msra.mxu0 %v1812
        %2118 = vmatprep.subr.bf16.mxu0 0
        %2119 = vmatpush1.bf16.msra.mxu0 %v1819
        %2120 = vmatprep.subr.bf16.mxu0 0
        %2121 = vmatpush1.bf16.msra.mxu0 %v1826
        %2122 = vmatprep.subr.bf16.mxu0 0
        %2123 = vmatpush1.bf16.msra.mxu0 %v1833
        %2124 = vmatprep.subr.bf16.mxu0 0
        %2125 = vmatpush1.bf16.msra.mxu0 %v1840
        %2126 = vmatprep.subr.bf16.mxu0 0
        %2127 = vmatpush1.bf16.msra.mxu0 %v1847
        %2128 = vmatprep.subr.bf16.mxu0 0
        %2129 = vmatpush1.bf16.msra.mxu0 %v1854
        %2130 = vmatprep.subr.bf16.mxu0 0
        %2131 = vmatpush1.bf16.msra.mxu0 %v1861
        %2132 = vmatprep.subr.bf16.mxu0 0
        %2133 = vmatpush1.bf16.msra.mxu0 %v1868
        %2134 = vmatprep.subr.bf16.mxu0 0
        %2135 = vmatpush1.bf16.msra.mxu0 %v1875
        %2136 = vmatprep.subr.bf16.mxu0 0
        %2137 = vmatpush1.bf16.msra.mxu0 %v1882
        %2138 = vmatprep.subr.bf16.mxu0 0
        %2139 = vmatpush1.bf16.msra.mxu0 %v1889
        %2140 = vmatprep.subr.bf16.mxu0 0
        %2141 = vmatpush1.bf16.msra.mxu0 %v1896
        %2142 = vmatprep.subr.bf16.mxu0 0
        %2143 = vmatpush1.bf16.msra.mxu0 %v1903
        %2144 = vmatprep.subr.bf16.mxu0 0
        %2145 = vmatpush1.bf16.msra.mxu0 %v1910
        %2146 = vmatprep.mubr.bf16.mxu0 %v1948
        %2147 = vmatmul.mubr.bf16.gmra.mrb[0].mxu0 %v1947
        %v2148 = vpop.f32.mrb[0].mxu0
        %v2149 = vadd.f32 %v1918, %v2148
        %v2150 = vpop.f32.mrb[0].mxu0
        %v2151 = vpop.f32.mrb[0].mxu0
        %v2152 = vadd.f32 %v1923, %v2151
        %v2153 = vpop.f32.mrb[0].mxu0
        %2154 = vmatprep.mubr.bf16.mxu0 %v1950
        %2155 = vmatmul.mubr.bf16.gmra.mrb[0].mxu0 %v1949
        %v2156 = vpop.f32.mrb[0].mxu0
        %v2157 = vadd.f32 %v1928, %v2156
        %v2158 = vpop.f32.mrb[0].mxu0
        %v2159 = vpop.f32.mrb[0].mxu0
        %v2160 = vadd.f32 %v1933, %v2159
        %v2161 = vpop.f32.mrb[0].mxu0
        %2162 = vdwg.mxu0
        %v2163 = vmax.f32 %v1990, 0.0
        %v2164 = vmax.f32 %v1992, 0.0
        %v2165 = vmax.f32 %v2043, 0.0
        %v2166 = vmax.f32 %v2045, 0.0
        %v2167 = vmax.f32 %v2096, 0.0
        %v2168 = vmax.f32 %v2098, 0.0
        %v2169 = vmax.f32 %v2149, 0.0
        %v2170 = vmax.f32 %v1994, 0.0
        %v2171 = vmax.f32 %v1996, 0.0
        %v2172 = vmax.f32 %v2047, 0.0
        %v2173 = vmax.f32 %v2049, 0.0
        %v2174 = vmax.f32 %v2100, 0.0
        %v2175 = vmax.f32 %v2102, 0.0
        %v2176 = vmax.f32 %v2152, 0.0
        %v2177 = vmax.f32 %v2000, 0.0
        %v2178 = vmax.f32 %v2002, 0.0
        %v2179 = vmax.f32 %v2053, 0.0
        %v2180 = vmax.f32 %v2055, 0.0
        %v2181 = vmax.f32 %v2106, 0.0
        %v2182 = vmax.f32 %v2108, 0.0
        %v2183 = vmax.f32 %v2157, 0.0
        %v2184 = vmax.f32 %v2004, 0.0
        %v2185 = vmax.f32 %v2006, 0.0
        %v2186 = vmax.f32 %v2057, 0.0
        %v2187 = vmax.f32 %v2059, 0.0
        %v2188 = vmax.f32 %v2110, 0.0
        %v2189 = vmax.f32 %v2112, 0.0
        %v2190 = vmax.f32 %v2160, 0.0
        %2191 = vst [vmem:[%s200] sm:$0xff] %v2163
        %2192 = vst [vmem:[%s200 + $0x8] sm:$0xff] %v2164
        %2193 = vst [vmem:[%s200 + $0x10] sm:$0xff] %v2165
        %2194 = vst [vmem:[%s200 + $0x18] sm:$0xff] %v2166
        %2195 = vst [vmem:[%s200 + $0x20] sm:$0xff] %v2167
        %2196 = vst [vmem:[%s200 + $0x28] sm:$0xff] %v2168
        %2197 = vst.msk [vmem:[%s200 + $0x30] sm:$0xff] %vm1786, %v2169
        %2198 = vst [vmem:[%s200 + $0x38] sm:$0xff] %v2170
        %2199 = vst [vmem:[%s200 + $0x40] sm:$0xff] %v2171
        %2200 = vst [vmem:[%s200 + $0x48] sm:$0xff] %v2172
        %2201 = vst [vmem:[%s200 + $0x50] sm:$0xff] %v2173
        %2202 = vst [vmem:[%s200 + $0x58] sm:$0xff] %v2174
        %2203 = vst [vmem:[%s200 + $0x60] sm:$0xff] %v2175
        %2204 = vst.msk [vmem:[%s200 + $0x68] sm:$0xff] %vm1786, %v2176
        %2205 = vst [vmem:[%s200 + $0x70] sm:$0xff] %v2177
        %2206 = vst [vmem:[%s200 + $0x78] sm:$0xff] %v2178
        %2207 = vst [vmem:[%s200 + $0x80] sm:$0xff] %v2179
        %2208 = vst [vmem:[%s200 + $0x88] sm:$0xff] %v2180
        %2209 = vst [vmem:[%s200 + $0x90] sm:$0xff] %v2181
        %2210 = vst [vmem:[%s200 + $0x98] sm:$0xff] %v2182
        %2211 = vst.msk [vmem:[%s200 + $0xa0] sm:$0xff] %vm1786, %v2183
        %2212 = vst [vmem:[%s200 + $0xa8] sm:$0xff] %v2184
        %2213 = vst [vmem:[%s200 + $0xb0] sm:$0xff] %v2185
        %2214 = vst [vmem:[%s200 + $0xb8] sm:$0xff] %v2186
        %2215 = vst [vmem:[%s200 + $0xc0] sm:$0xff] %v2187
        %2216 = vst [vmem:[%s200 + $0xc8] sm:$0xff] %v2188
        %2217 = vst [vmem:[%s200 + $0xd0] sm:$0xff] %v2189
        %2218 = vst.msk [vmem:[%s200 + $0xd8] sm:$0xff] %vm1786, %v2190
        %s2219 = sand.u32 %s110, 1
        %s2220 = scalar_lea.sflag [#allocation5], %s2219
        %s2221 = sand.u32 %s110, 1
        %s2222 = smul.addr %s2221, 224
        %s2223 = scalar_lea.vmem [#allocation6], %s2222
        // Predicated region
        $region37: #{tpu_custom_call.1} parent=31 // pred_check
          %p2224 = pneg %p120
        $region38: #{tpu_custom_call.1} parent=31 // pred_check_branch
          %2226 = sbr.rel (%p2224) target = $region40
        $region39: #{tpu_custom_call.1} parent=31 // pred_region
          %s2228 = ssub.s32 3584, 3584
          %2229 = vsyncadd %s2220, %s2228
          %s2230 = smul.addr %s25, 28
          %s2231 = smul.addr %s24, 28
          %s2232 = sadd.s32 %s2230, %s2231
          %s2233 = smul.addr %s2232, 128
          %s2234 = scalar_lea.hbm %s3, %s2233
          %s2235 = sshll.u32 %s2223, 4
          %s2236 = int_to_ptr.vmem [resolvable:$true] %s2235
          %2241 = dma.vmem_to_hbm [thread:$0]  %s2236, 3584, %s2234, %s2220, 896, 896, 56
        $region40: #{tpu_custom_call.1} parent=31 // pred_fallthru
          _
      $region32: #{tpu_custom_call.1} parent=5 // pred_fallthru
        _
      %p2242 = scmp.le.s32.totalorder 2, %s15
      // Predicated region
      $region41: #{tpu_custom_call.1} parent=5 // pred_check
        %p2243 = pneg %p2242
      $region42: #{tpu_custom_call.1} parent=5 // pred_check_branch
        %2245 = sbr.rel (%p2243) target = $region44
      $region43: #{tpu_custom_call.1} parent=5 // pred_region
        %s2246 = ssub.s32 %s15, 2
        // Predicated region
        $region45: #{tpu_custom_call.1} parent=43 // pred_check
          %p2247 = pneg %p126
        $region46: #{tpu_custom_call.1} parent=43 // pred_check_branch
          %2249 = sbr.rel (%p2247) target = $region48
        $region47: #{tpu_custom_call.1} parent=43 // pred_region
          %s2250 = sand.u32 %s111, 1
          %s2251 = scalar_lea.sflag [#allocation5], %s2250
          %s2252 = sand.u32 %s111, 1
          %s2253 = smul.addr %s2252, 224
          %s2254 = scalar_lea.vmem [#allocation6], %s2253
          %2255 = dma.done %s2251, 3584
        $region48: #{tpu_custom_call.1} parent=43 // pred_fallthru
          _
      $region44: #{tpu_custom_call.1} parent=5 // pred_fallthru
        _
    $region6: #{tpu_custom_call.1} parent=1 // loop_footer
      %s19 = sadd.s32 1, %s15
    $region7: #{tpu_custom_call.1} parent=1 // loop_footer_branch
      %14 = sbr.rel target = $region3
    $region8: #{tpu_custom_call.1} parent=1 // loop_exit
      _
    %2256 = vsyncpa [#allocation4], 1
    %s2257 = scalar_lea.sflag [#allocation4], 1
    %2258 = vsyncpa %s2257, 1
    %2259 = vsyncpa [#allocation5], 1
    %s2260 = scalar_lea.sflag [#allocation5], 1
    %2261 = vsyncpa %s2260, 1

</llo_original>
